<compile_context>
chip_gen: v7x
topology: tpu7x:2x2x1
jax: 0.10.0
libtpu: 0.0.40
codegen_flags: <defaults>
</compile_context>

<pallas_src>
import jax
import jax.numpy as jnp
from jax.experimental import pallas as pl
from jax.experimental.pallas import tpu as pltpu


def _round_up(x, m):
    return ((x + m - 1) // m) * m


# Transposed-conv tap map: (output parity p, padded-neighbourhood offset d) -> kernel
# tap index, derived from oy = 2*iy - 1 + kh (PyTorch ConvTranspose2d, k=4, s=2, p=1).
_TAP = {(0, 0): 3, (0, 1): 1, (1, 1): 2, (1, 2): 0}


def _convt_bnstats_kernel(p_ref, w_ref, y_ref, stats_ref):
    """Phase-decomposed ConvTranspose2d + per-tile BatchNorm partial sums.

    p_ref    : (9*Cin, LT)      im2col patches for this lane tile; rows are (dy, dx)
                                row-major blocks of Cin channels, lanes are (n, y, x).
    w_ref    : (8, Cout, 2*Cin) dense per-(phase, dy-half) weight blocks.
    y_ref    : (4*Cout, LT)     conv output; row = (2*py+px)*Cout + c, lane-dense.
    stats_ref: (1, 4*Cout, 2)   per-tile partial [sum, sum-of-squares] per (phase, ch).
    """
    Cout = w_ref.shape[1]
    Cin = w_ref.shape[2] // 2
    sums, sqs = [], []
    for py in range(2):
        for px in range(2):
            ph = 2 * py + px
            # dy = py + h needs dx in {px, px+1}: two adjacent dx blocks, i.e. two
            # contiguous 2*Cin K-slices -> both matmuls are fully dense (no zero taps).
            r0 = (3 * py + px) * Cin          # dy = py
            r1 = (3 * (py + 1) + px) * Cin    # dy = py + 1
            z = jnp.dot(w_ref[2 * ph + 0], p_ref[r0:r0 + 2 * Cin, :],
                        preferred_element_type=jnp.float32)
            z = z + jnp.dot(w_ref[2 * ph + 1], p_ref[r1:r1 + 2 * Cin, :],
                            preferred_element_type=jnp.float32)
            y_ref[ph * Cout:(ph + 1) * Cout, :] = z
            sums.append(jnp.sum(z, axis=1, keepdims=True))
            sqs.append(jnp.sum(z * z, axis=1, keepdims=True))
    stats_ref[0] = jnp.concatenate(
        [jnp.concatenate(sums, axis=0), jnp.concatenate(sqs, axis=0)], axis=1)


def unet_up_forward(x, skip, w, gamma, beta, eps=1e-5,
                    lane_tile=2048, use_bf16_mxu=False):
    """x: (N, Cin, H, W); skip: (N, Cskip, 2H, 2W); w: (Cin, Cout, 4, 4) PyTorch layout."""
    N, Cin, H, W = x.shape
    Cout = w.shape[1]
    OH, OW = 2 * H, 2 * W
    HW = H * W
    total = N * HW

    x = x.astype(jnp.float32)
    skip = skip.astype(jnp.float32)
    w = w.astype(jnp.float32)

    # Lane tiling over the flattened (batch, spatial) axis.
    assert lane_tile % 128 == 0
    lt = min(lane_tile, _round_up(total, 128))
    grid = _round_up(total, lt) // lt
    padded = grid * lt            # zero lane padding contributes 0 to sum and sumsq

    # ---- glue (fused XLA pass): lane-dense im2col patches (9*Cin, N*H*W) ------------
    xp = jnp.pad(x, ((0, 0), (0, 0), (1, 1), (1, 1)))
    cols = [xp[:, :, dy:dy + H, dx:dx + W] for dy in range(3) for dx in range(3)]
    patches = jnp.stack(cols, axis=0)                          # (9, N, Cin, H, W)
    patches = patches.transpose(0, 2, 1, 3, 4).reshape(9 * Cin, total)
    if padded != total:
        patches = jnp.pad(patches, ((0, 0), (0, padded - total)))

    # ---- glue: dense per-(phase, dy-half) weight blocks (8, Cout, 2*Cin) ------------
    # Depends only on w: in a real model, precompute once outside the step.
    wt = jnp.transpose(w, (1, 0, 2, 3))                        # (Cout, Cin, kh, kw)
    blocks = []
    for py in range(2):
        for px in range(2):
            for h in range(2):
                ky = _TAP[(py, py + h)]
                blocks.append(jnp.concatenate(
                    [wt[:, :, ky, _TAP[(px, px)]],
                     wt[:, :, ky, _TAP[(px, px + 1)]]], axis=1))   # (Cout, 2*Cin)
    wblk = jnp.stack(blocks, axis=0)                           # (8, Cout, 2*Cin)

    if use_bf16_mxu:  # v6e / v7x: bf16 MXU operands, accumulation stays f32
        patches = patches.astype(jnp.bfloat16)
        wblk = wblk.astype(jnp.bfloat16)

    # ---- Pallas: phase-decomposed ConvT + per-tile BN partial stats -----------------
    # Production sizing: raise vmem_limit_bytes / lane_tile on v5e & v6e (128 MiB
    # VMEM); on v7x keep (patches+y) blocks double-buffered under ~48 MiB of its
    # 64 MiB and single-buffer the constant wblk block (pipeline_mode=pl.Buffered(1))
    # once it is multi-MB — at these shapes wblk is ~2 KB so defaults are kept.
    y, stats = pl.pallas_call(
        _convt_bnstats_kernel,
        out_shape=(jax.ShapeDtypeStruct((4 * Cout, padded), jnp.float32),
                   jax.ShapeDtypeStruct((grid, 4 * Cout, 2), jnp.float32)),
        grid_spec=pltpu.PrefetchScalarGridSpec(
            num_scalar_prefetch=0,
            grid=(grid,),
            in_specs=[
                pl.BlockSpec((9 * Cin, lt), lambda t: (0, t)),
                pl.BlockSpec((8, Cout, 2 * Cin), lambda t: (0, 0, 0)),
            ],
            out_specs=[
                pl.BlockSpec((4 * Cout, lt), lambda t: (0, t)),
                pl.BlockSpec((1, 4 * Cout, 2), lambda t: (t, 0, 0)),
            ]),
        compiler_params=pltpu.CompilerParams(
            dimension_semantics=("parallel",),   # per-tile partial stats -> safe
            vmem_limit_bytes=32 * 1024 * 1024),
    )(patches, wblk)

    # ---- glue: fold training-mode BatchNorm stats into a per-channel affine ---------
    # TODO(synk): BatchNorm running-stat update (momentum=0.8) is a training-time side
    # effect that does not affect this forward output; not reproduced here.
    st = stats.sum(axis=0)                                # (4*Cout, 2) over lane tiles
    ssum = st[:, 0].reshape(4, Cout).sum(axis=0)          # reduce the 4 phases
    ssq = st[:, 1].reshape(4, Cout).sum(axis=0)
    count = float(N * OH * OW)
    mean = ssum / count
    # E[x^2]-E[x]^2 in f32; for very large N*OH*OW with |mean| >> std switch to
    # per-tile centered partial sums (the clamp only guards tiny negatives).
    var = jnp.maximum(ssq / count - mean * mean, 0.0)
    scale = gamma.astype(jnp.float32) * jax.lax.rsqrt(var + eps)
    shift = beta.astype(jnp.float32) - mean * scale

    # ---- glue (one fused XLA epilogue): BN affine + ReLU + depth-to-space + concat --
    yb = y[:, :total].reshape(2, 2, Cout, N, H, W)        # (py, px, c, n, qy, qx)
    yb = jnp.maximum(yb * scale[None, None, :, None, None, None]
                     + shift[None, None, :, None, None, None], 0.0)
    conv = yb.transpose(3, 2, 4, 0, 5, 1).reshape(N, Cout, OH, OW)
    # skip never enters Pallas: the concat reads it once and writes it once.
    return jnp.concatenate([conv, skip], axis=1)


if __name__ == "__main__":
    key = jax.random.PRNGKey(0)
    k1, k2, k3, k4, k5 = jax.random.split(key, 5)

    # UNetUp(in_size=8, out_size=4); skip_input has out_size channels (UNet style)
    N, Cin, Cout, H, W = 2, 8, 4, 16, 16
    x = jax.random.normal(k1, (N, Cin, H, W), jnp.float32)
    skip = jax.random.normal(k2, (N, Cout, 2 * H, 2 * W), jnp.float32)
    w = 0.05 * jax.random.normal(k3, (Cin, Cout, 4, 4), jnp.float32)   # ConvT weight
    gamma = 1.0 + 0.1 * jax.random.normal(k4, (Cout,), jnp.float32)    # BN weight
    beta = 0.1 * jax.random.normal(k5, (Cout,), jnp.float32)           # BN bias

    out = jax.jit(unet_up_forward)(x, skip, w, gamma, beta)
    out = jax.block_until_ready(out)

    # pure-JAX reference (training-mode BatchNorm, matching nn.BatchNorm2d defaults)
    wr = jnp.transpose(w, (1, 0, 2, 3))[:, :, ::-1, ::-1]
    y_ref = jax.lax.conv_general_dilated(
        x, wr, window_strides=(1, 1), padding=((2, 2), (2, 2)),
        lhs_dilation=(2, 2), dimension_numbers=("NCHW", "OIHW", "NCHW"),
        precision=jax.lax.Precision.HIGHEST)
    mu = y_ref.mean(axis=(0, 2, 3), keepdims=True)
    var = ((y_ref - mu) ** 2).mean(axis=(0, 2, 3), keepdims=True)
    yn = (y_ref - mu) / jnp.sqrt(var + 1e-5) * gamma.reshape(1, -1, 1, 1) \
         + beta.reshape(1, -1, 1, 1)
    ref = jnp.concatenate([jnp.maximum(yn, 0.0), skip], axis=1)

    assert out.shape == ref.shape, (out.shape, ref.shape)
    err = float(jnp.max(jnp.abs(out - ref)))
    assert jnp.allclose(out, ref, atol=1e-3, rtol=1e-3), err
    print("KERNEL_OK")
</pallas_src>

<mosaic_0001>
module attributes {stable_mosaic.version = 11 : i64} {
  func.func @_convt_bnstats_kernel(%arg0: i32, %arg1: memref<72x512xf32, #tpu.memory_space<vmem>>, %arg2: memref<8x4x16xf32, #tpu.memory_space<vmem>>, %arg3: memref<16x512xf32, #tpu.memory_space<vmem>>, %arg4: memref<1x16x2xf32, #tpu.memory_space<vmem>>) attributes {dimension_semantics = [#tpu.dimension_semantics<parallel>], iteration_bounds = array<i64: 1>, scalar_prefetch = 0 : i64, scratch_operands = 0 : i64, tpu.core_type = #tpu.core_type<tc>, window_params = [{transform_indices = @transform_0, window_bounds = array<i64: 72, 512>}, {pipeline_mode = #tpu.pipeline_mode<synchronous>, transform_indices = @transform_1, window_bounds = array<i64: 8, 4, 16>}, {transform_indices = @transform_2, window_bounds = array<i64: 16, 512>}, {transform_indices = @transform_3, window_bounds = array<i64: 1, 16, 2>}]} {
    %c0 = arith.constant 0 : index
    %c0_0 = arith.constant 0 : index
    %c0_1 = arith.constant 0 : index
    %0 = vector.load %arg2[%c0, %c0_0, %c0_1] : memref<8x4x16xf32, #tpu.memory_space<vmem>>, vector<1x4x16xf32>
    %1 = vector.shape_cast %0 : vector<1x4x16xf32> to vector<4x16xf32>
    %c0_2 = arith.constant 0 : index
    %c0_3 = arith.constant 0 : index
    %2 = vector.load %arg1[%c0_2, %c0_3] : memref<72x512xf32, #tpu.memory_space<vmem>>, vector<16x512xf32>
    %cst = arith.constant dense<0.000000e+00> : vector<4x512xf32>
    %3 = tpu.matmul %1, %2, %cst {dimension_numbers = #tpu.dot_dimension_numbers<[1], [0], [0], [1], [0, 0, 1, 1], [], []>} : vector<4x16xf32>, vector<16x512xf32>, vector<4x512xf32> -> vector<4x512xf32>
    %c1 = arith.constant 1 : index
    %c0_4 = arith.constant 0 : index
    %c0_5 = arith.constant 0 : index
    %4 = vector.load %arg2[%c1, %c0_4, %c0_5] : memref<8x4x16xf32, #tpu.memory_space<vmem>>, vector<1x4x16xf32>
    %5 = vector.shape_cast %4 : vector<1x4x16xf32> to vector<4x16xf32>
    %c24 = arith.constant 24 : index
    %c0_6 = arith.constant 0 : index
    %6 = vector.load %arg1[%c24, %c0_6] : memref<72x512xf32, #tpu.memory_space<vmem>>, vector<16x512xf32>
    %cst_7 = arith.constant dense<0.000000e+00> : vector<4x512xf32>
    %7 = tpu.matmul %5, %6, %cst_7 {dimension_numbers = #tpu.dot_dimension_numbers<[1], [0], [0], [1], [0, 0, 1, 1], [], []>} : vector<4x16xf32>, vector<16x512xf32>, vector<4x512xf32> -> vector<4x512xf32>
    %8 = arith.addf %3, %7 : vector<4x512xf32>
    %c0_8 = arith.constant 0 : index
    %c0_9 = arith.constant 0 : index
    %9 = vector.load %arg3[%c0_8, %c0_9] : memref<16x512xf32, #tpu.memory_space<vmem>>, vector<4x512xf32>
    tpu.vector_store %arg3[%c0_8, %c0_9], %8 {strides = array<i32>} : memref<16x512xf32, #tpu.memory_space<vmem>>, vector<4x512xf32>,
    %cst_10 = arith.constant dense<0.000000e+00> : vector<4xf32>
    %10 = vector.multi_reduction <add>, %8, %cst_10 [1] : vector<4x512xf32> to vector<4xf32>
    %11 = vector.shape_cast %10 : vector<4xf32> to vector<4x1xf32>
    %12 = arith.mulf %8, %8 : vector<4x512xf32>
    %cst_11 = arith.constant dense<0.000000e+00> : vector<4xf32>
    %13 = vector.multi_reduction <add>, %12, %cst_11 [1] : vector<4x512xf32> to vector<4xf32>
    %14 = vector.shape_cast %13 : vector<4xf32> to vector<4x1xf32>
    %c2 = arith.constant 2 : index
    %c0_12 = arith.constant 0 : index
    %c0_13 = arith.constant 0 : index
    %15 = vector.load %arg2[%c2, %c0_12, %c0_13] : memref<8x4x16xf32, #tpu.memory_space<vmem>>, vector<1x4x16xf32>
    %16 = vector.shape_cast %15 : vector<1x4x16xf32> to vector<4x16xf32>
    %c8 = arith.constant 8 : index
    %c0_14 = arith.constant 0 : index
    %17 = vector.load %arg1[%c8, %c0_14] : memref<72x512xf32, #tpu.memory_space<vmem>>, vector<16x512xf32>
    %cst_15 = arith.constant dense<0.000000e+00> : vector<4x512xf32>
    %18 = tpu.matmul %16, %17, %cst_15 {dimension_numbers = #tpu.dot_dimension_numbers<[1], [0], [0], [1], [0, 0, 1, 1], [], []>} : vector<4x16xf32>, vector<16x512xf32>, vector<4x512xf32> -> vector<4x512xf32>
    %c3 = arith.constant 3 : index
    %c0_16 = arith.constant 0 : index
    %c0_17 = arith.constant 0 : index
    %19 = vector.load %arg2[%c3, %c0_16, %c0_17] : memref<8x4x16xf32, #tpu.memory_space<vmem>>, vector<1x4x16xf32>
    %20 = vector.shape_cast %19 : vector<1x4x16xf32> to vector<4x16xf32>
    %c32 = arith.constant 32 : index
    %c0_18 = arith.constant 0 : index
    %21 = vector.load %arg1[%c32, %c0_18] : memref<72x512xf32, #tpu.memory_space<vmem>>, vector<16x512xf32>
    %cst_19 = arith.constant dense<0.000000e+00> : vector<4x512xf32>
    %22 = tpu.matmul %20, %21, %cst_19 {dimension_numbers = #tpu.dot_dimension_numbers<[1], [0], [0], [1], [0, 0, 1, 1], [], []>} : vector<4x16xf32>, vector<16x512xf32>, vector<4x512xf32> -> vector<4x512xf32>
    %23 = arith.addf %18, %22 : vector<4x512xf32>
    %c4 = arith.constant 4 : index
    %c0_20 = arith.constant 0 : index
    %24 = vector.load %arg3[%c4, %c0_20] : memref<16x512xf32, #tpu.memory_space<vmem>>, vector<4x512xf32>
    tpu.vector_store %arg3[%c4, %c0_20], %23 {strides = array<i32>} : memref<16x512xf32, #tpu.memory_space<vmem>>, vector<4x512xf32>,
    %cst_21 = arith.constant dense<0.000000e+00> : vector<4xf32>
    %25 = vector.multi_reduction <add>, %23, %cst_21 [1] : vector<4x512xf32> to vector<4xf32>
    %26 = vector.shape_cast %25 : vector<4xf32> to vector<4x1xf32>
    %27 = arith.mulf %23, %23 : vector<4x512xf32>
    %cst_22 = arith.constant dense<0.000000e+00> : vector<4xf32>
    %28 = vector.multi_reduction <add>, %27, %cst_22 [1] : vector<4x512xf32> to vector<4xf32>
    %29 = vector.shape_cast %28 : vector<4xf32> to vector<4x1xf32>
    %c4_23 = arith.constant 4 : index
    %c0_24 = arith.constant 0 : index
    %c0_25 = arith.constant 0 : index
    %30 = vector.load %arg2[%c4_23, %c0_24, %c0_25] : memref<8x4x16xf32, #tpu.memory_space<vmem>>, vector<1x4x16xf32>
    %31 = vector.shape_cast %30 : vector<1x4x16xf32> to vector<4x16xf32>
    %c24_26 = arith.constant 24 : index
    %c0_27 = arith.constant 0 : index
    %32 = vector.load %arg1[%c24_26, %c0_27] : memref<72x512xf32, #tpu.memory_space<vmem>>, vector<16x512xf32>
    %cst_28 = arith.constant dense<0.000000e+00> : vector<4x512xf32>
    %33 = tpu.matmul %31, %32, %cst_28 {dimension_numbers = #tpu.dot_dimension_numbers<[1], [0], [0], [1], [0, 0, 1, 1], [], []>} : vector<4x16xf32>, vector<16x512xf32>, vector<4x512xf32> -> vector<4x512xf32>
    %c5 = arith.constant 5 : index
    %c0_29 = arith.constant 0 : index
    %c0_30 = arith.constant 0 : index
    %34 = vector.load %arg2[%c5, %c0_29, %c0_30] : memref<8x4x16xf32, #tpu.memory_space<vmem>>, vector<1x4x16xf32>
    %35 = vector.shape_cast %34 : vector<1x4x16xf32> to vector<4x16xf32>
    %c48 = arith.constant 48 : index
    %c0_31 = arith.constant 0 : index
    %36 = vector.load %arg1[%c48, %c0_31] : memref<72x512xf32, #tpu.memory_space<vmem>>, vector<16x512xf32>
    %cst_32 = arith.constant dense<0.000000e+00> : vector<4x512xf32>
    %37 = tpu.matmul %35, %36, %cst_32 {dimension_numbers = #tpu.dot_dimension_numbers<[1], [0], [0], [1], [0, 0, 1, 1], [], []>} : vector<4x16xf32>, vector<16x512xf32>, vector<4x512xf32> -> vector<4x512xf32>
    %38 = arith.addf %33, %37 : vector<4x512xf32>
    %c8_33 = arith.constant 8 : index
    %c0_34 = arith.constant 0 : index
    %39 = vector.load %arg3[%c8_33, %c0_34] : memref<16x512xf32, #tpu.memory_space<vmem>>, vector<4x512xf32>
    tpu.vector_store %arg3[%c8_33, %c0_34], %38 {strides = array<i32>} : memref<16x512xf32, #tpu.memory_space<vmem>>, vector<4x512xf32>,
    %cst_35 = arith.constant dense<0.000000e+00> : vector<4xf32>
    %40 = vector.multi_reduction <add>, %38, %cst_35 [1] : vector<4x512xf32> to vector<4xf32>
    %41 = vector.shape_cast %40 : vector<4xf32> to vector<4x1xf32>
    %42 = arith.mulf %38, %38 : vector<4x512xf32>
    %cst_36 = arith.constant dense<0.000000e+00> : vector<4xf32>
    %43 = vector.multi_reduction <add>, %42, %cst_36 [1] : vector<4x512xf32> to vector<4xf32>
    %44 = vector.shape_cast %43 : vector<4xf32> to vector<4x1xf32>
    %c6 = arith.constant 6 : index
    %c0_37 = arith.constant 0 : index
    %c0_38 = arith.constant 0 : index
    %45 = vector.load %arg2[%c6, %c0_37, %c0_38] : memref<8x4x16xf32, #tpu.memory_space<vmem>>, vector<1x4x16xf32>
    %46 = vector.shape_cast %45 : vector<1x4x16xf32> to vector<4x16xf32>
    %c32_39 = arith.constant 32 : index
    %c0_40 = arith.constant 0 : index
    %47 = vector.load %arg1[%c32_39, %c0_40] : memref<72x512xf32, #tpu.memory_space<vmem>>, vector<16x512xf32>
    %cst_41 = arith.constant dense<0.000000e+00> : vector<4x512xf32>
    %48 = tpu.matmul %46, %47, %cst_41 {dimension_numbers = #tpu.dot_dimension_numbers<[1], [0], [0], [1], [0, 0, 1, 1], [], []>} : vector<4x16xf32>, vector<16x512xf32>, vector<4x512xf32> -> vector<4x512xf32>
    %c7 = arith.constant 7 : index
    %c0_42 = arith.constant 0 : index
    %c0_43 = arith.constant 0 : index
    %49 = vector.load %arg2[%c7, %c0_42, %c0_43] : memref<8x4x16xf32, #tpu.memory_space<vmem>>, vector<1x4x16xf32>
    %50 = vector.shape_cast %49 : vector<1x4x16xf32> to vector<4x16xf32>
    %c56 = arith.constant 56 : index
    %c0_44 = arith.constant 0 : index
    %51 = vector.load %arg1[%c56, %c0_44] : memref<72x512xf32, #tpu.memory_space<vmem>>, vector<16x512xf32>
    %cst_45 = arith.constant dense<0.000000e+00> : vector<4x512xf32>
    %52 = tpu.matmul %50, %51, %cst_45 {dimension_numbers = #tpu.dot_dimension_numbers<[1], [0], [0], [1], [0, 0, 1, 1], [], []>} : vector<4x16xf32>, vector<16x512xf32>, vector<4x512xf32> -> vector<4x512xf32>
    %53 = arith.addf %48, %52 : vector<4x512xf32>
    %c12 = arith.constant 12 : index
    %c0_46 = arith.constant 0 : index
    %54 = vector.load %arg3[%c12, %c0_46] : memref<16x512xf32, #tpu.memory_space<vmem>>, vector<4x512xf32>
    tpu.vector_store %arg3[%c12, %c0_46], %53 {strides = array<i32>} : memref<16x512xf32, #tpu.memory_space<vmem>>, vector<4x512xf32>,
    %cst_47 = arith.constant dense<0.000000e+00> : vector<4xf32>
    %55 = vector.multi_reduction <add>, %53, %cst_47 [1] : vector<4x512xf32> to vector<4xf32>
    %56 = vector.shape_cast %55 : vector<4xf32> to vector<4x1xf32>
    %57 = arith.mulf %53, %53 : vector<4x512xf32>
    %cst_48 = arith.constant dense<0.000000e+00> : vector<4xf32>
    %58 = vector.multi_reduction <add>, %57, %cst_48 [1] : vector<4x512xf32> to vector<4xf32>
    %59 = vector.shape_cast %58 : vector<4xf32> to vector<4x1xf32>
    %60 = tpu.concatenate %11, %26, %41, %56 in 0 : vector<4x1xf32>, vector<4x1xf32>, vector<4x1xf32>, vector<4x1xf32> -> vector<16x1xf32>
    %61 = tpu.concatenate %14, %29, %44, %59 in 0 : vector<4x1xf32>, vector<4x1xf32>, vector<4x1xf32>, vector<4x1xf32> -> vector<16x1xf32>
    %62 = tpu.concatenate %60, %61 in 1 : vector<16x1xf32>, vector<16x1xf32> -> vector<16x2xf32>
    %c0_49 = arith.constant 0 : index
    %c0_50 = arith.constant 0 : index
    %c0_51 = arith.constant 0 : index
    %63 = vector.load %arg4[%c0_49, %c0_50, %c0_51] : memref<1x16x2xf32, #tpu.memory_space<vmem>>, vector<1x16x2xf32>
    %64 = vector.shape_cast %63 : vector<1x16x2xf32> to vector<16x2xf32>
    %65 = vector.shape_cast %62 : vector<16x2xf32> to vector<1x16x2xf32>
    tpu.vector_store %arg4[%c0_49, %c0_50, %c0_51], %65 {strides = array<i32>} : memref<1x16x2xf32, #tpu.memory_space<vmem>>, vector<1x16x2xf32>,
    return
  }
  func.func @transform_0(%arg0: i32) -> (i32, i32) {
    %c0_i32 = arith.constant 0 : i32
    %c0_i32_0 = arith.constant 0 : i32
    return %c0_i32, %arg0 : i32, i32
  }
  func.func @transform_1(%arg0: i32) -> (i32, i32, i32) {
    %c0_i32 = arith.constant 0 : i32
    %c0_i32_0 = arith.constant 0 : i32
    %c0_i32_1 = arith.constant 0 : i32
    %c0_i32_2 = arith.constant 0 : i32
    return %c0_i32, %c0_i32_0, %c0_i32_1 : i32, i32, i32
  }
  func.func @transform_2(%arg0: i32) -> (i32, i32) {
    %c0_i32 = arith.constant 0 : i32
    %c0_i32_0 = arith.constant 0 : i32
    return %c0_i32, %arg0 : i32, i32
  }
  func.func @transform_3(%arg0: i32) -> (i32, i32, i32) {
    %c0_i32 = arith.constant 0 : i32
    %c0_i32_0 = arith.constant 0 : i32
    %c0_i32_1 = arith.constant 0 : i32
    return %arg0, %c0_i32, %c0_i32_0 : i32, i32, i32
  }
}

</mosaic_0001>

<llo_original>
// kernel: squeeze.34
$region0: #{squeeze.34}
  %s0 = inlined_call_operand.vmem [shape: f32[16], index: 0, kind: input, shape index: {}]
  %s1 = inlined_call_operand.vmem [shape: f32[4,4], index: 1, kind: output, shape index: {}]
  $region1: #{squeeze.34} parent=0
    #allocation0 [shape = 'u8[4096]{0}', space=vmem, size = 0x1000, scoped, tag = 'scoped mem for output reshape']
    #allocation1 [shape = 'u8[4096]{0}', space=vmem, size = 0x1000, scoped, tag = 'scoped mem for input reshape']
    %s3 = sshllo.u32 0, 1
    %v4 = vld [vmem:[%s0] sm:%s3]
    %5 = vst [vmem:[#allocation1] sm:%s3] %v4
    %v6 = vld [vmem:[#allocation1] sm:$0x1]
    %vm7 = vcmask 31744
    %8 = vst.msk [vmem:[#allocation0] sm:$0x1] %vm7, %v6
    %v9 = vld [vmem:[#allocation1] sm:$0x1]
    %10 = vrot.lane.b32.xlu0 %v9, 124
    %v11 = vpop.permute.xlu0 %10
    %vm12 = vcmask 31744
    %s13 = scalar_lea.vmem [#allocation0], 1
    %14 = vst.msk [vmem:[%s13] sm:$0x1] %vm12, %v11
    %v15 = vld [vmem:[#allocation1] sm:$0x1]
    %16 = vrot.lane.b32.xlu0 %v15, 120
    %v17 = vpop.permute.xlu0 %16
    %vm18 = vcmask 31744
    %s19 = scalar_lea.vmem [#allocation0], 2
    %20 = vst.msk [vmem:[%s19] sm:$0x1] %vm18, %v17
    %v21 = vld [vmem:[#allocation1] sm:$0x1]
    %22 = vrot.lane.b32.xlu0 %v21, 116
    %v23 = vpop.permute.xlu0 %22
    %vm24 = vcmask 31744
    %s25 = scalar_lea.vmem [#allocation0], 3
    %26 = vst.msk [vmem:[%s25] sm:$0x1] %vm24, %v23
    %s28 = sshllo.u32 0, 4
    %v30 = vld [vmem:[#allocation0] sm:%s28]
    %s31 = sshllo.u32 0, 4
    %32 = vst [vmem:[%s1] sm:%s31] %v30

// kernel: unet_up_forward.1
$region0: #{unet_up_forward.1}
  #allocation0 [shape = 'u32[]', space=smem, size = 0x4, offset = 0x4, fixed_abs, tag = 'smem constant byte address 0x4 - core index']
  #allocation1 [shape = 'u32[144,128]{1,0:T(1,128)}', space=vmem, size = 0x12000, scoped, tag = 'internal scratch']
  %s0 = inlined_call_operand.vmem [shape: f32[72,512], index: 0, kind: input, shape index: {}]
  %s1 = inlined_call_operand.vmem [shape: f32[8,4,16], index: 1, kind: input, shape index: {}]
  %s2 = inlined_call_operand.vmem [shape: f32[16,512], index: 2, kind: output, shape index: {0}]
  %s3 = inlined_call_operand.vmem [shape: f32[1,16,2], index: 3, kind: output, shape index: {1}]
  %4 = xla_tuple %s2, %s3
  %s5 = sld [smem:[#allocation0]]
  $region26: #{unet_up_forward.1} parent=0
    _
  %s7 = ssub.s32 1, %s5
  %s8 = scalar_select 0, %s7, %s5
  // Predicated region
  $region2: #{unet_up_forward.1} parent=0 // pred_check
    _
  $region3: #{unet_up_forward.1} parent=0 // pred_check_branch
    %10 = sbr.rel (0) target = $region5
  $region4: #{unet_up_forward.1} parent=0 // pred_region
    _
  $region5: #{unet_up_forward.1} parent=0 // pred_fallthru
    _
  // Predicated region
  $region6: #{unet_up_forward.1} parent=0 // pred_check
    _
  $region7: #{unet_up_forward.1} parent=0 // pred_check_branch
    %12 = sbr.rel (0) target = $region9
  $region8: #{unet_up_forward.1} parent=0 // pred_region
    _
  $region9: #{unet_up_forward.1} parent=0 // pred_fallthru
    _
  %v13 = vld [vmem:[%s1] sm:$0xf]
  %v14 = vld [vmem:[%s0] sm:$0xff]
  %v15 = vld [vmem:[%s0 + $0x8] sm:$0xff]
  %v16 = vld [vmem:[%s0 + $0x10] sm:$0xff]
  %v17 = vld [vmem:[%s0 + $0x18] sm:$0xff]
  %v18 = vld [vmem:[%s0 + $0x20] sm:$0xff]
  %v19 = vld [vmem:[%s0 + $0x28] sm:$0xff]
  %v20 = vld [vmem:[%s0 + $0x30] sm:$0xff]
  %v21 = vld [vmem:[%s0 + $0x38] sm:$0xff]
  %s22 = scalar_lea.vmem %s1, 4
  %v23 = vld [vmem:[%s22] sm:$0xf]
  %v24 = vld [vmem:[%s0 + $0x60] sm:$0xff]
  %v25 = vld [vmem:[%s0 + $0x68] sm:$0xff]
  %v26 = vld [vmem:[%s0 + $0x70] sm:$0xff]
  %v27 = vld [vmem:[%s0 + $0x78] sm:$0xff]
  %v28 = vld [vmem:[%s0 + $0x80] sm:$0xff]
  %v29 = vld [vmem:[%s0 + $0x88] sm:$0xff]
  %v30 = vld [vmem:[%s0 + $0x90] sm:$0xff]
  %v31 = vld [vmem:[%s0 + $0x98] sm:$0xff]
  %vm32 = vcmask 130048
  %v34 = vsel %vm32, %v23, 0
  %36 = vmatprep.subr.mxu0 %v25
  %37 = vmatpush1.msra.mxu0 %v24
  %38 = vmatprep.subr.mxu0 %v29
  %39 = vmatpush1.msra.mxu0 %v28
  %40 = vmatprep.subr.mxu0 0.0
  %41 = vmatpush1.msra.mxu0 0.0
  %42 = vmatprep.subr.mxu0 0.0
  %43 = vmatpush1.msra.mxu0 0.0
  %44 = vmatprep.subr.mxu0 0.0
  %45 = vmatpush1.msra.mxu0 0.0
  %46 = vmatprep.subr.mxu0 0.0
  %47 = vmatpush1.msra.mxu0 0.0
  %48 = vmatprep.subr.mxu0 0.0
  %49 = vmatpush1.msra.mxu0 0.0
  %50 = vmatprep.subr.mxu0 0.0
  %51 = vmatpush1.msra.mxu0 0.0
  %52 = vmatprep.subr.mxu0 0.0
  %53 = vmatpush1.msra.mxu0 0.0
  %54 = vmatprep.subr.mxu0 0.0
  %55 = vmatpush1.msra.mxu0 0.0
  %56 = vmatprep.subr.mxu0 0.0
  %57 = vmatpush1.msra.mxu0 0.0
  %58 = vmatprep.subr.mxu0 0.0
  %59 = vmatpush1.msra.mxu0 0.0
  %60 = vmatprep.subr.mxu0 0.0
  %61 = vmatpush1.msra.mxu0 0.0
  %62 = vmatprep.subr.mxu0 0.0
  %63 = vmatpush1.msra.mxu0 0.0
  %64 = vmatprep.subr.mxu0 0.0
  %65 = vmatpush1.msra.mxu0 0.0
  %66 = vmatprep.subr.mxu0 0.0
  %67 = vmatpush1.msra.mxu0 0.0
  %68 = vmatprep.subr.mxu0 0.0
  %69 = vmatpush1.msra.mxu0 0.0
  %70 = vmatprep.subr.mxu0 0.0
  %71 = vmatpush1.msra.mxu0 0.0
  %72 = vmatprep.subr.mxu0 0.0
  %73 = vmatpush1.msra.mxu0 0.0
  %74 = vmatprep.subr.mxu0 0.0
  %75 = vmatpush1.msra.mxu0 0.0
  %76 = vmatprep.subr.mxu0 0.0
  %77 = vmatpush1.msra.mxu0 0.0
  %78 = vmatprep.subr.mxu0 0.0
  %79 = vmatpush1.msra.mxu0 0.0
  %80 = vmatprep.subr.mxu0 0.0
  %81 = vmatpush1.msra.mxu0 0.0
  %82 = vmatprep.subr.mxu0 0.0
  %83 = vmatpush1.msra.mxu0 0.0
  %84 = vmatprep.subr.mxu0 0.0
  %85 = vmatpush1.msra.mxu0 0.0
  %86 = vmatprep.subr.mxu0 0.0
  %87 = vmatpush1.msra.mxu0 0.0
  %88 = vmatprep.subr.mxu0 0.0
  %89 = vmatpush1.msra.mxu0 0.0
  %90 = vmatprep.subr.mxu0 0.0
  %91 = vmatpush1.msra.mxu0 0.0
  %92 = vmatprep.subr.mxu0 0.0
  %93 = vmatpush1.msra.mxu0 0.0
  %94 = vmatprep.subr.mxu0 0.0
  %95 = vmatpush1.msra.mxu0 0.0
  %96 = vmatprep.subr.mxu0 0.0
  %97 = vmatpush1.msra.mxu0 0.0
  %98 = vmatprep.subr.mxu0 0.0
  %99 = vmatpush1.msra.mxu0 0.0
  %100 = vmatprep.mubr.f32.mxu0 0.0
  %101 = vmatmul.mubr.f32.gmra.mrb[0].mxu0 %v34
  %v102 = vpop.f32.mrb[0].mxu0
  %v103 = vadd.f32 0.0, %v102
  %v104 = vpop.f32.mrb[0].mxu0
  %v105 = vadd.f32 0.0, %v104
  %106 = vdwg.mxu0
  %107 = vmatprep.subr.mxu0 %v27
  %108 = vmatpush1.msra.mxu0 %v26
  %109 = vmatprep.subr.mxu0 %v31
  %110 = vmatpush1.msra.mxu0 %v30
  %111 = vmatprep.subr.mxu0 0.0
  %112 = vmatpush1.msra.mxu0 0.0
  %113 = vmatprep.subr.mxu0 0.0
  %114 = vmatpush1.msra.mxu0 0.0
  %115 = vmatprep.subr.mxu0 0.0
  %116 = vmatpush1.msra.mxu0 0.0
  %117 = vmatprep.subr.mxu0 0.0
  %118 = vmatpush1.msra.mxu0 0.0
  %119 = vmatprep.subr.mxu0 0.0
  %120 = vmatpush1.msra.mxu0 0.0
  %121 = vmatprep.subr.mxu0 0.0
  %122 = vmatpush1.msra.mxu0 0.0
  %123 = vmatprep.subr.mxu0 0.0
  %124 = vmatpush1.msra.mxu0 0.0
  %125 = vmatprep.subr.mxu0 0.0
  %126 = vmatpush1.msra.mxu0 0.0
  %127 = vmatprep.subr.mxu0 0.0
  %128 = vmatpush1.msra.mxu0 0.0
  %129 = vmatprep.subr.mxu0 0.0
  %130 = vmatpush1.msra.mxu0 0.0
  %131 = vmatprep.subr.mxu0 0.0
  %132 = vmatpush1.msra.mxu0 0.0
  %133 = vmatprep.subr.mxu0 0.0
  %134 = vmatpush1.msra.mxu0 0.0
  %135 = vmatprep.subr.mxu0 0.0
  %136 = vmatpush1.msra.mxu0 0.0
  %137 = vmatprep.subr.mxu0 0.0
  %138 = vmatpush1.msra.mxu0 0.0
  %139 = vmatprep.subr.mxu0 0.0
  %140 = vmatpush1.msra.mxu0 0.0
  %141 = vmatprep.subr.mxu0 0.0
  %142 = vmatpush1.msra.mxu0 0.0
  %143 = vmatprep.subr.mxu0 0.0
  %144 = vmatpush1.msra.mxu0 0.0
  %145 = vmatprep.subr.mxu0 0.0
  %146 = vmatpush1.msra.mxu0 0.0
  %147 = vmatprep.subr.mxu0 0.0
  %148 = vmatpush1.msra.mxu0 0.0
  %149 = vmatprep.subr.mxu0 0.0
  %150 = vmatpush1.msra.mxu0 0.0
  %151 = vmatprep.subr.mxu0 0.0
  %152 = vmatpush1.msra.mxu0 0.0
  %153 = vmatprep.subr.mxu0 0.0
  %154 = vmatpush1.msra.mxu0 0.0
  %155 = vmatprep.subr.mxu0 0.0
  %156 = vmatpush1.msra.mxu0 0.0
  %157 = vmatprep.subr.mxu0 0.0
  %158 = vmatpush1.msra.mxu0 0.0
  %159 = vmatprep.subr.mxu0 0.0
  %160 = vmatpush1.msra.mxu0 0.0
  %161 = vmatprep.subr.mxu0 0.0
  %162 = vmatpush1.msra.mxu0 0.0
  %163 = vmatprep.subr.mxu0 0.0
  %164 = vmatpush1.msra.mxu0 0.0
  %165 = vmatprep.subr.mxu0 0.0
  %166 = vmatpush1.msra.mxu0 0.0
  %167 = vmatprep.subr.mxu0 0.0
  %168 = vmatpush1.msra.mxu0 0.0
  %169 = vmatprep.subr.mxu0 0.0
  %170 = vmatpush1.msra.mxu0 0.0
  %171 = vmatprep.mubr.f32.mxu0 0.0
  %172 = vmatmul.mubr.f32.gmra.mrb[0].mxu0 %v34
  %v173 = vpop.f32.mrb[0].mxu0
  %v174 = vadd.f32 0.0, %v173
  %v175 = vpop.f32.mrb[0].mxu0
  %v176 = vadd.f32 0.0, %v175
  %177 = vdwg.mxu0
  %v179 = vsel %vm32, %v13, 0
  %181 = vmatprep.subr.mxu0 %v15
  %182 = vmatpush1.msra.mxu0 %v14
  %183 = vmatprep.subr.mxu0 %v19
  %184 = vmatpush1.msra.mxu0 %v18
  %185 = vmatprep.subr.mxu0 0.0
  %186 = vmatpush1.msra.mxu0 0.0
  %187 = vmatprep.subr.mxu0 0.0
  %188 = vmatpush1.msra.mxu0 0.0
  %189 = vmatprep.subr.mxu0 0.0
  %190 = vmatpush1.msra.mxu0 0.0
  %191 = vmatprep.subr.mxu0 0.0
  %192 = vmatpush1.msra.mxu0 0.0
  %193 = vmatprep.subr.mxu0 0.0
  %194 = vmatpush1.msra.mxu0 0.0
  %195 = vmatprep.subr.mxu0 0.0
  %196 = vmatpush1.msra.mxu0 0.0
  %197 = vmatprep.subr.mxu0 0.0
  %198 = vmatpush1.msra.mxu0 0.0
  %199 = vmatprep.subr.mxu0 0.0
  %200 = vmatpush1.msra.mxu0 0.0
  %201 = vmatprep.subr.mxu0 0.0
  %202 = vmatpush1.msra.mxu0 0.0
  %203 = vmatprep.subr.mxu0 0.0
  %204 = vmatpush1.msra.mxu0 0.0
  %205 = vmatprep.subr.mxu0 0.0
  %206 = vmatpush1.msra.mxu0 0.0
  %207 = vmatprep.subr.mxu0 0.0
  %208 = vmatpush1.msra.mxu0 0.0
  %209 = vmatprep.subr.mxu0 0.0
  %210 = vmatpush1.msra.mxu0 0.0
  %211 = vmatprep.subr.mxu0 0.0
  %212 = vmatpush1.msra.mxu0 0.0
  %213 = vmatprep.subr.mxu0 0.0
  %214 = vmatpush1.msra.mxu0 0.0
  %215 = vmatprep.subr.mxu0 0.0
  %216 = vmatpush1.msra.mxu0 0.0
  %217 = vmatprep.subr.mxu0 0.0
  %218 = vmatpush1.msra.mxu0 0.0
  %219 = vmatprep.subr.mxu0 0.0
  %220 = vmatpush1.msra.mxu0 0.0
  %221 = vmatprep.subr.mxu0 0.0
  %222 = vmatpush1.msra.mxu0 0.0
  %223 = vmatprep.subr.mxu0 0.0
  %224 = vmatpush1.msra.mxu0 0.0
  %225 = vmatprep.subr.mxu0 0.0
  %226 = vmatpush1.msra.mxu0 0.0
  %227 = vmatprep.subr.mxu0 0.0
  %228 = vmatpush1.msra.mxu0 0.0
  %229 = vmatprep.subr.mxu0 0.0
  %230 = vmatpush1.msra.mxu0 0.0
  %231 = vmatprep.subr.mxu0 0.0
  %232 = vmatpush1.msra.mxu0 0.0
  %233 = vmatprep.subr.mxu0 0.0
  %234 = vmatpush1.msra.mxu0 0.0
  %235 = vmatprep.subr.mxu0 0.0
  %236 = vmatpush1.msra.mxu0 0.0
  %237 = vmatprep.subr.mxu0 0.0
  %238 = vmatpush1.msra.mxu0 0.0
  %239 = vmatprep.subr.mxu0 0.0
  %240 = vmatpush1.msra.mxu0 0.0
  %241 = vmatprep.subr.mxu0 0.0
  %242 = vmatpush1.msra.mxu0 0.0
  %243 = vmatprep.subr.mxu0 0.0
  %244 = vmatpush1.msra.mxu0 0.0
  %245 = vmatprep.mubr.f32.mxu0 0.0
  %246 = vmatmul.mubr.f32.gmra.mrb[0].mxu0 %v179
  %v247 = vpop.f32.mrb[0].mxu0
  %v248 = vadd.f32 %v103, %v247
  %v249 = vpop.f32.mrb[0].mxu0
  %v250 = vadd.f32 %v105, %v249
  %251 = vdwg.mxu0
  %252 = vmatprep.subr.mxu0 %v17
  %253 = vmatpush1.msra.mxu0 %v16
  %254 = vmatprep.subr.mxu0 %v21
  %255 = vmatpush1.msra.mxu0 %v20
  %256 = vmatprep.subr.mxu0 0.0
  %257 = vmatpush1.msra.mxu0 0.0
  %258 = vmatprep.subr.mxu0 0.0
  %259 = vmatpush1.msra.mxu0 0.0
  %260 = vmatprep.subr.mxu0 0.0
  %261 = vmatpush1.msra.mxu0 0.0
  %262 = vmatprep.subr.mxu0 0.0
  %263 = vmatpush1.msra.mxu0 0.0
  %264 = vmatprep.subr.mxu0 0.0
  %265 = vmatpush1.msra.mxu0 0.0
  %266 = vmatprep.subr.mxu0 0.0
  %267 = vmatpush1.msra.mxu0 0.0
  %268 = vmatprep.subr.mxu0 0.0
  %269 = vmatpush1.msra.mxu0 0.0
  %270 = vmatprep.subr.mxu0 0.0
  %271 = vmatpush1.msra.mxu0 0.0
  %272 = vmatprep.subr.mxu0 0.0
  %273 = vmatpush1.msra.mxu0 0.0
  %274 = vmatprep.subr.mxu0 0.0
  %275 = vmatpush1.msra.mxu0 0.0
  %276 = vmatprep.subr.mxu0 0.0
  %277 = vmatpush1.msra.mxu0 0.0
  %278 = vmatprep.subr.mxu0 0.0
  %279 = vmatpush1.msra.mxu0 0.0
  %280 = vmatprep.subr.mxu0 0.0
  %281 = vmatpush1.msra.mxu0 0.0
  %282 = vmatprep.subr.mxu0 0.0
  %283 = vmatpush1.msra.mxu0 0.0
  %284 = vmatprep.subr.mxu0 0.0
  %285 = vmatpush1.msra.mxu0 0.0
  %286 = vmatprep.subr.mxu0 0.0
  %287 = vmatpush1.msra.mxu0 0.0
  %288 = vmatprep.subr.mxu0 0.0
  %289 = vmatpush1.msra.mxu0 0.0
  %290 = vmatprep.subr.mxu0 0.0
  %291 = vmatpush1.msra.mxu0 0.0
  %292 = vmatprep.subr.mxu0 0.0
  %293 = vmatpush1.msra.mxu0 0.0
  %294 = vmatprep.subr.mxu0 0.0
  %295 = vmatpush1.msra.mxu0 0.0
  %296 = vmatprep.subr.mxu0 0.0
  %297 = vmatpush1.msra.mxu0 0.0
  %298 = vmatprep.subr.mxu0 0.0
  %299 = vmatpush1.msra.mxu0 0.0
  %300 = vmatprep.subr.mxu0 0.0
  %301 = vmatpush1.msra.mxu0 0.0
  %302 = vmatprep.subr.mxu0 0.0
  %303 = vmatpush1.msra.mxu0 0.0
  %304 = vmatprep.subr.mxu0 0.0
  %305 = vmatpush1.msra.mxu0 0.0
  %306 = vmatprep.subr.mxu0 0.0
  %307 = vmatpush1.msra.mxu0 0.0
  %308 = vmatprep.subr.mxu0 0.0
  %309 = vmatpush1.msra.mxu0 0.0
  %310 = vmatprep.subr.mxu0 0.0
  %311 = vmatpush1.msra.mxu0 0.0
  %312 = vmatprep.subr.mxu0 0.0
  %313 = vmatpush1.msra.mxu0 0.0
  %314 = vmatprep.subr.mxu0 0.0
  %315 = vmatpush1.msra.mxu0 0.0
  %316 = vmatprep.mubr.f32.mxu0 0.0
  %317 = vmatmul.mubr.f32.gmra.mrb[0].mxu0 %v179
  %v318 = vpop.f32.mrb[0].mxu0
  %v319 = vadd.f32 %v174, %v318
  %v320 = vpop.f32.mrb[0].mxu0
  %v321 = vadd.f32 %v176, %v320
  %322 = vdwg.mxu0
  %323 = vst [vmem:[%s2] sm:$0xf] %v248
  %324 = vst [vmem:[%s2 + $0x8] sm:$0xf] %v250
  %325 = vst [vmem:[%s2 + $0x10] sm:$0xf] %v319
  %326 = vst [vmem:[%s2 + $0x18] sm:$0xf] %v321
  %vm327 = vcmask 1043456
  %v328 = vsel %vm327, %v248, 0.0
  %v329 = vsel %vm327, %v250, 0.0
  %v330 = vadd.f32 %v328, %v329
  %v331 = vsel %vm327, %v319, 0.0
  %v332 = vadd.f32 %v330, %v331
  %v333 = vsel %vm327, %v321, 0.0
  %v334 = vadd.f32 %v332, %v333
  %335 = vadd.xlane.f32.xlu0 %v334
  %v336 = vpop.xlane.xlu0 %335
  %v337 = vmul.f32 %v248, %v248
  %v338 = vmul.f32 %v250, %v250
  %v339 = vmul.f32 %v319, %v319
  %v340 = vmul.f32 %v321, %v321
  %v341 = vsel %vm327, %v337, 0.0
  %v342 = vsel %vm327, %v338, 0.0
  %v343 = vadd.f32 %v341, %v342
  %v344 = vsel %vm327, %v339, 0.0
  %v345 = vadd.f32 %v343, %v344
  %v346 = vsel %vm327, %v340, 0.0
  %v347 = vadd.f32 %v345, %v346
  %348 = vadd.xlane.f32.xlu0 %v347
  %v349 = vpop.xlane.xlu0 %348
  %s350 = scalar_lea.vmem %s1, 8
  %v351 = vld [vmem:[%s350] sm:$0xf]
  %v352 = vld [vmem:[%s0 + $0x20] sm:$0xff]
  %v353 = vld [vmem:[%s0 + $0x28] sm:$0xff]
  %v354 = vld [vmem:[%s0 + $0x30] sm:$0xff]
  %v355 = vld [vmem:[%s0 + $0x38] sm:$0xff]
  %v356 = vld [vmem:[%s0 + $0x40] sm:$0xff]
  %v357 = vld [vmem:[%s0 + $0x48] sm:$0xff]
  %v358 = vld [vmem:[%s0 + $0x50] sm:$0xff]
  %v359 = vld [vmem:[%s0 + $0x58] sm:$0xff]
  %s360 = scalar_lea.vmem %s1, 12
  %v361 = vld [vmem:[%s360] sm:$0xf]
  %v362 = vld [vmem:[%s0 + $0x80] sm:$0xff]
  %v363 = vld [vmem:[%s0 + $0x88] sm:$0xff]
  %v364 = vld [vmem:[%s0 + $0x90] sm:$0xff]
  %v365 = vld [vmem:[%s0 + $0x98] sm:$0xff]
  %v366 = vld [vmem:[%s0 + $0xa0] sm:$0xff]
  %v367 = vld [vmem:[%s0 + $0xa8] sm:$0xff]
  %v368 = vld [vmem:[%s0 + $0xb0] sm:$0xff]
  %v369 = vld [vmem:[%s0 + $0xb8] sm:$0xff]
  %v371 = vsel %vm32, %v361, 0
  %373 = vmatprep.subr.mxu0 %v363
  %374 = vmatpush1.msra.mxu0 %v362
  %375 = vmatprep.subr.mxu0 %v367
  %376 = vmatpush1.msra.mxu0 %v366
  %377 = vmatprep.subr.mxu0 0.0
  %378 = vmatpush1.msra.mxu0 0.0
  %379 = vmatprep.subr.mxu0 0.0
  %380 = vmatpush1.msra.mxu0 0.0
  %381 = vmatprep.subr.mxu0 0.0
  %382 = vmatpush1.msra.mxu0 0.0
  %383 = vmatprep.subr.mxu0 0.0
  %384 = vmatpush1.msra.mxu0 0.0
  %385 = vmatprep.subr.mxu0 0.0
  %386 = vmatpush1.msra.mxu0 0.0
  %387 = vmatprep.subr.mxu0 0.0
  %388 = vmatpush1.msra.mxu0 0.0
  %389 = vmatprep.subr.mxu0 0.0
  %390 = vmatpush1.msra.mxu0 0.0
  %391 = vmatprep.subr.mxu0 0.0
  %392 = vmatpush1.msra.mxu0 0.0
  %393 = vmatprep.subr.mxu0 0.0
  %394 = vmatpush1.msra.mxu0 0.0
  %395 = vmatprep.subr.mxu0 0.0
  %396 = vmatpush1.msra.mxu0 0.0
  %397 = vmatprep.subr.mxu0 0.0
  %398 = vmatpush1.msra.mxu0 0.0
  %399 = vmatprep.subr.mxu0 0.0
  %400 = vmatpush1.msra.mxu0 0.0
  %401 = vmatprep.subr.mxu0 0.0
  %402 = vmatpush1.msra.mxu0 0.0
  %403 = vmatprep.subr.mxu0 0.0
  %404 = vmatpush1.msra.mxu0 0.0
  %405 = vmatprep.subr.mxu0 0.0
  %406 = vmatpush1.msra.mxu0 0.0
  %407 = vmatprep.subr.mxu0 0.0
  %408 = vmatpush1.msra.mxu0 0.0
  %409 = vmatprep.subr.mxu0 0.0
  %410 = vmatpush1.msra.mxu0 0.0
  %411 = vmatprep.subr.mxu0 0.0
  %412 = vmatpush1.msra.mxu0 0.0
  %413 = vmatprep.subr.mxu0 0.0
  %414 = vmatpush1.msra.mxu0 0.0
  %415 = vmatprep.subr.mxu0 0.0
  %416 = vmatpush1.msra.mxu0 0.0
  %417 = vmatprep.subr.mxu0 0.0
  %418 = vmatpush1.msra.mxu0 0.0
  %419 = vmatprep.subr.mxu0 0.0
  %420 = vmatpush1.msra.mxu0 0.0
  %421 = vmatprep.subr.mxu0 0.0
  %422 = vmatpush1.msra.mxu0 0.0
  %423 = vmatprep.subr.mxu0 0.0
  %424 = vmatpush1.msra.mxu0 0.0
  %425 = vmatprep.subr.mxu0 0.0
  %426 = vmatpush1.msra.mxu0 0.0
  %427 = vmatprep.subr.mxu0 0.0
  %428 = vmatpush1.msra.mxu0 0.0
  %429 = vmatprep.subr.mxu0 0.0
  %430 = vmatpush1.msra.mxu0 0.0
  %431 = vmatprep.subr.mxu0 0.0
  %432 = vmatpush1.msra.mxu0 0.0
  %433 = vmatprep.subr.mxu0 0.0
  %434 = vmatpush1.msra.mxu0 0.0
  %435 = vmatprep.subr.mxu0 0.0
  %436 = vmatpush1.msra.mxu0 0.0
  %437 = vmatprep.mubr.f32.mxu0 0.0
  %438 = vmatmul.mubr.f32.gmra.mrb[0].mxu0 %v371
  %v439 = vpop.f32.mrb[0].mxu0
  %v440 = vadd.f32 0.0, %v439
  %v441 = vpop.f32.mrb[0].mxu0
  %v442 = vadd.f32 0.0, %v441
  %443 = vdwg.mxu0
  %444 = vmatprep.subr.mxu0 %v365
  %445 = vmatpush1.msra.mxu0 %v364
  %446 = vmatprep.subr.mxu0 %v369
  %447 = vmatpush1.msra.mxu0 %v368
  %448 = vmatprep.subr.mxu0 0.0
  %449 = vmatpush1.msra.mxu0 0.0
  %450 = vmatprep.subr.mxu0 0.0
  %451 = vmatpush1.msra.mxu0 0.0
  %452 = vmatprep.subr.mxu0 0.0
  %453 = vmatpush1.msra.mxu0 0.0
  %454 = vmatprep.subr.mxu0 0.0
  %455 = vmatpush1.msra.mxu0 0.0
  %456 = vmatprep.subr.mxu0 0.0
  %457 = vmatpush1.msra.mxu0 0.0
  %458 = vmatprep.subr.mxu0 0.0
  %459 = vmatpush1.msra.mxu0 0.0
  %460 = vmatprep.subr.mxu0 0.0
  %461 = vmatpush1.msra.mxu0 0.0
  %462 = vmatprep.subr.mxu0 0.0
  %463 = vmatpush1.msra.mxu0 0.0
  %464 = vmatprep.subr.mxu0 0.0
  %465 = vmatpush1.msra.mxu0 0.0
  %466 = vmatprep.subr.mxu0 0.0
  %467 = vmatpush1.msra.mxu0 0.0
  %468 = vmatprep.subr.mxu0 0.0
  %469 = vmatpush1.msra.mxu0 0.0
  %470 = vmatprep.subr.mxu0 0.0
  %471 = vmatpush1.msra.mxu0 0.0
  %472 = vmatprep.subr.mxu0 0.0
  %473 = vmatpush1.msra.mxu0 0.0
  %474 = vmatprep.subr.mxu0 0.0
  %475 = vmatpush1.msra.mxu0 0.0
  %476 = vmatprep.subr.mxu0 0.0
  %477 = vmatpush1.msra.mxu0 0.0
  %478 = vmatprep.subr.mxu0 0.0
  %479 = vmatpush1.msra.mxu0 0.0
  %480 = vmatprep.subr.mxu0 0.0
  %481 = vmatpush1.msra.mxu0 0.0
  %482 = vmatprep.subr.mxu0 0.0
  %483 = vmatpush1.msra.mxu0 0.0
  %484 = vmatprep.subr.mxu0 0.0
  %485 = vmatpush1.msra.mxu0 0.0
  %486 = vmatprep.subr.mxu0 0.0
  %487 = vmatpush1.msra.mxu0 0.0
  %488 = vmatprep.subr.mxu0 0.0
  %489 = vmatpush1.msra.mxu0 0.0
  %490 = vmatprep.subr.mxu0 0.0
  %491 = vmatpush1.msra.mxu0 0.0
  %492 = vmatprep.subr.mxu0 0.0
  %493 = vmatpush1.msra.mxu0 0.0
  %494 = vmatprep.subr.mxu0 0.0
  %495 = vmatpush1.msra.mxu0 0.0
  %496 = vmatprep.subr.mxu0 0.0
  %497 = vmatpush1.msra.mxu0 0.0
  %498 = vmatprep.subr.mxu0 0.0
  %499 = vmatpush1.msra.mxu0 0.0
  %500 = vmatprep.subr.mxu0 0.0
  %501 = vmatpush1.msra.mxu0 0.0
  %502 = vmatprep.subr.mxu0 0.0
  %503 = vmatpush1.msra.mxu0 0.0
  %504 = vmatprep.subr.mxu0 0.0
  %505 = vmatpush1.msra.mxu0 0.0
  %506 = vmatprep.subr.mxu0 0.0
  %507 = vmatpush1.msra.mxu0 0.0
  %508 = vmatprep.mubr.f32.mxu0 0.0
  %509 = vmatmul.mubr.f32.gmra.mrb[0].mxu0 %v371
  %v510 = vpop.f32.mrb[0].mxu0
  %v511 = vadd.f32 0.0, %v510
  %v512 = vpop.f32.mrb[0].mxu0
  %v513 = vadd.f32 0.0, %v512
  %514 = vdwg.mxu0
  %v516 = vsel %vm32, %v351, 0
  %518 = vmatprep.subr.mxu0 %v353
  %519 = vmatpush1.msra.mxu0 %v352
  %520 = vmatprep.subr.mxu0 %v357
  %521 = vmatpush1.msra.mxu0 %v356
  %522 = vmatprep.subr.mxu0 0.0
  %523 = vmatpush1.msra.mxu0 0.0
  %524 = vmatprep.subr.mxu0 0.0
  %525 = vmatpush1.msra.mxu0 0.0
  %526 = vmatprep.subr.mxu0 0.0
  %527 = vmatpush1.msra.mxu0 0.0
  %528 = vmatprep.subr.mxu0 0.0
  %529 = vmatpush1.msra.mxu0 0.0
  %530 = vmatprep.subr.mxu0 0.0
  %531 = vmatpush1.msra.mxu0 0.0
  %532 = vmatprep.subr.mxu0 0.0
  %533 = vmatpush1.msra.mxu0 0.0
  %534 = vmatprep.subr.mxu0 0.0
  %535 = vmatpush1.msra.mxu0 0.0
  %536 = vmatprep.subr.mxu0 0.0
  %537 = vmatpush1.msra.mxu0 0.0
  %538 = vmatprep.subr.mxu0 0.0
  %539 = vmatpush1.msra.mxu0 0.0
  %540 = vmatprep.subr.mxu0 0.0
  %541 = vmatpush1.msra.mxu0 0.0
  %542 = vmatprep.subr.mxu0 0.0
  %543 = vmatpush1.msra.mxu0 0.0
  %544 = vmatprep.subr.mxu0 0.0
  %545 = vmatpush1.msra.mxu0 0.0
  %546 = vmatprep.subr.mxu0 0.0
  %547 = vmatpush1.msra.mxu0 0.0
  %548 = vmatprep.subr.mxu0 0.0
  %549 = vmatpush1.msra.mxu0 0.0
  %550 = vmatprep.subr.mxu0 0.0
  %551 = vmatpush1.msra.mxu0 0.0
  %552 = vmatprep.subr.mxu0 0.0
  %553 = vmatpush1.msra.mxu0 0.0
  %554 = vmatprep.subr.mxu0 0.0
  %555 = vmatpush1.msra.mxu0 0.0
  %556 = vmatprep.subr.mxu0 0.0
  %557 = vmatpush1.msra.mxu0 0.0
  %558 = vmatprep.subr.mxu0 0.0
  %559 = vmatpush1.msra.mxu0 0.0
  %560 = vmatprep.subr.mxu0 0.0
  %561 = vmatpush1.msra.mxu0 0.0
  %562 = vmatprep.subr.mxu0 0.0
  %563 = vmatpush1.msra.mxu0 0.0
  %564 = vmatprep.subr.mxu0 0.0
  %565 = vmatpush1.msra.mxu0 0.0
  %566 = vmatprep.subr.mxu0 0.0
  %567 = vmatpush1.msra.mxu0 0.0
  %568 = vmatprep.subr.mxu0 0.0
  %569 = vmatpush1.msra.mxu0 0.0
  %570 = vmatprep.subr.mxu0 0.0
  %571 = vmatpush1.msra.mxu0 0.0
  %572 = vmatprep.subr.mxu0 0.0
  %573 = vmatpush1.msra.mxu0 0.0
  %574 = vmatprep.subr.mxu0 0.0
  %575 = vmatpush1.msra.mxu0 0.0
  %576 = vmatprep.subr.mxu0 0.0
  %577 = vmatpush1.msra.mxu0 0.0
  %578 = vmatprep.subr.mxu0 0.0
  %579 = vmatpush1.msra.mxu0 0.0
  %580 = vmatprep.subr.mxu0 0.0
  %581 = vmatpush1.msra.mxu0 0.0
  %582 = vmatprep.mubr.f32.mxu0 0.0
  %583 = vmatmul.mubr.f32.gmra.mrb[0].mxu0 %v516
  %v584 = vpop.f32.mrb[0].mxu0
  %v585 = vadd.f32 %v440, %v584
  %v586 = vpop.f32.mrb[0].mxu0
  %v587 = vadd.f32 %v442, %v586
  %588 = vdwg.mxu0
  %589 = vmatprep.subr.mxu0 %v355
  %590 = vmatpush1.msra.mxu0 %v354
  %591 = vmatprep.subr.mxu0 %v359
  %592 = vmatpush1.msra.mxu0 %v358
  %593 = vmatprep.subr.mxu0 0.0
  %594 = vmatpush1.msra.mxu0 0.0
  %595 = vmatprep.subr.mxu0 0.0
  %596 = vmatpush1.msra.mxu0 0.0
  %597 = vmatprep.subr.mxu0 0.0
  %598 = vmatpush1.msra.mxu0 0.0
  %599 = vmatprep.subr.mxu0 0.0
  %600 = vmatpush1.msra.mxu0 0.0
  %601 = vmatprep.subr.mxu0 0.0
  %602 = vmatpush1.msra.mxu0 0.0
  %603 = vmatprep.subr.mxu0 0.0
  %604 = vmatpush1.msra.mxu0 0.0
  %605 = vmatprep.subr.mxu0 0.0
  %606 = vmatpush1.msra.mxu0 0.0
  %607 = vmatprep.subr.mxu0 0.0
  %608 = vmatpush1.msra.mxu0 0.0
  %609 = vmatprep.subr.mxu0 0.0
  %610 = vmatpush1.msra.mxu0 0.0
  %611 = vmatprep.subr.mxu0 0.0
  %612 = vmatpush1.msra.mxu0 0.0
  %613 = vmatprep.subr.mxu0 0.0
  %614 = vmatpush1.msra.mxu0 0.0
  %615 = vmatprep.subr.mxu0 0.0
  %616 = vmatpush1.msra.mxu0 0.0
  %617 = vmatprep.subr.mxu0 0.0
  %618 = vmatpush1.msra.mxu0 0.0
  %619 = vmatprep.subr.mxu0 0.0
  %620 = vmatpush1.msra.mxu0 0.0
  %621 = vmatprep.subr.mxu0 0.0
  %622 = vmatpush1.msra.mxu0 0.0
  %623 = vmatprep.subr.mxu0 0.0
  %624 = vmatpush1.msra.mxu0 0.0
  %625 = vmatprep.subr.mxu0 0.0
  %626 = vmatpush1.msra.mxu0 0.0
  %627 = vmatprep.subr.mxu0 0.0
  %628 = vmatpush1.msra.mxu0 0.0
  %629 = vmatprep.subr.mxu0 0.0
  %630 = vmatpush1.msra.mxu0 0.0
  %631 = vmatprep.subr.mxu0 0.0
  %632 = vmatpush1.msra.mxu0 0.0
  %633 = vmatprep.subr.mxu0 0.0
  %634 = vmatpush1.msra.mxu0 0.0
  %635 = vmatprep.subr.mxu0 0.0
  %636 = vmatpush1.msra.mxu0 0.0
  %637 = vmatprep.subr.mxu0 0.0
  %638 = vmatpush1.msra.mxu0 0.0
  %639 = vmatprep.subr.mxu0 0.0
  %640 = vmatpush1.msra.mxu0 0.0
  %641 = vmatprep.subr.mxu0 0.0
  %642 = vmatpush1.msra.mxu0 0.0
  %643 = vmatprep.subr.mxu0 0.0
  %644 = vmatpush1.msra.mxu0 0.0
  %645 = vmatprep.subr.mxu0 0.0
  %646 = vmatpush1.msra.mxu0 0.0
  %647 = vmatprep.subr.mxu0 0.0
  %648 = vmatpush1.msra.mxu0 0.0
  %649 = vmatprep.subr.mxu0 0.0
  %650 = vmatpush1.msra.mxu0 0.0
  %651 = vmatprep.subr.mxu0 0.0
  %652 = vmatpush1.msra.mxu0 0.0
  %653 = vmatprep.mubr.f32.mxu0 0.0
  %654 = vmatmul.mubr.f32.gmra.mrb[0].mxu0 %v516
  %v655 = vpop.f32.mrb[0].mxu0
  %v656 = vadd.f32 %v511, %v655
  %v657 = vpop.f32.mrb[0].mxu0
  %v658 = vadd.f32 %v513, %v657
  %659 = vdwg.mxu0
  %v664 = vrot.slane %v585, 4
  %v665 = vrot.slane %v587, 4
  %v666 = vrot.slane %v656, 4
  %v667 = vrot.slane %v658, 4
  %672 = vst [vmem:[%s2] sm:$0xf0] %v664
  %673 = vst [vmem:[%s2 + $0x8] sm:$0xf0] %v665
  %674 = vst [vmem:[%s2 + $0x10] sm:$0xf0] %v666
  %675 = vst [vmem:[%s2 + $0x18] sm:$0xf0] %v667
  %v676 = vsel %vm327, %v585, 0.0
  %v677 = vsel %vm327, %v587, 0.0
  %v678 = vadd.f32 %v676, %v677
  %v679 = vsel %vm327, %v656, 0.0
  %v680 = vadd.f32 %v678, %v679
  %v681 = vsel %vm327, %v658, 0.0
  %v682 = vadd.f32 %v680, %v681
  %683 = vadd.xlane.f32.xlu0 %v682
  %v684 = vpop.xlane.xlu0 %683
  %v685 = vmul.f32 %v585, %v585
  %v686 = vmul.f32 %v587, %v587
  %v687 = vmul.f32 %v656, %v656
  %v688 = vmul.f32 %v658, %v658
  %v689 = vsel %vm327, %v685, 0.0
  %v690 = vsel %vm327, %v686, 0.0
  %v691 = vadd.f32 %v689, %v690
  %v692 = vsel %vm327, %v687, 0.0
  %v693 = vadd.f32 %v691, %v692
  %v694 = vsel %vm327, %v688, 0.0
  %v695 = vadd.f32 %v693, %v694
  %696 = vadd.xlane.f32.xlu0 %v695
  %v697 = vpop.xlane.xlu0 %696
  %s698 = scalar_lea.vmem %s1, 16
  %v699 = vld [vmem:[%s698] sm:$0xf]
  %v700 = vld [vmem:[%s0 + $0x60] sm:$0xff]
  %v701 = vld [vmem:[%s0 + $0x68] sm:$0xff]
  %v702 = vld [vmem:[%s0 + $0x70] sm:$0xff]
  %v703 = vld [vmem:[%s0 + $0x78] sm:$0xff]
  %v704 = vld [vmem:[%s0 + $0x80] sm:$0xff]
  %v705 = vld [vmem:[%s0 + $0x88] sm:$0xff]
  %v706 = vld [vmem:[%s0 + $0x90] sm:$0xff]
  %v707 = vld [vmem:[%s0 + $0x98] sm:$0xff]
  %s708 = scalar_lea.vmem %s1, 20
  %v709 = vld [vmem:[%s708] sm:$0xf]
  %v710 = vld [vmem:[%s0 + $0xc0] sm:$0xff]
  %v711 = vld [vmem:[%s0 + $0xc8] sm:$0xff]
  %v712 = vld [vmem:[%s0 + $0xd0] sm:$0xff]
  %v713 = vld [vmem:[%s0 + $0xd8] sm:$0xff]
  %v714 = vld [vmem:[%s0 + $0xe0] sm:$0xff]
  %v715 = vld [vmem:[%s0 + $0xe8] sm:$0xff]
  %v716 = vld [vmem:[%s0 + $0xf0] sm:$0xff]
  %v717 = vld [vmem:[%s0 + $0xf8] sm:$0xff]
  %v719 = vsel %vm32, %v709, 0
  %721 = vmatprep.subr.mxu0 %v711
  %722 = vmatpush1.msra.mxu0 %v710
  %723 = vmatprep.subr.mxu0 %v715
  %724 = vmatpush1.msra.mxu0 %v714
  %725 = vmatprep.subr.mxu0 0.0
  %726 = vmatpush1.msra.mxu0 0.0
  %727 = vmatprep.subr.mxu0 0.0
  %728 = vmatpush1.msra.mxu0 0.0
  %729 = vmatprep.subr.mxu0 0.0
  %730 = vmatpush1.msra.mxu0 0.0
  %731 = vmatprep.subr.mxu0 0.0
  %732 = vmatpush1.msra.mxu0 0.0
  %733 = vmatprep.subr.mxu0 0.0
  %734 = vmatpush1.msra.mxu0 0.0
  %735 = vmatprep.subr.mxu0 0.0
  %736 = vmatpush1.msra.mxu0 0.0
  %737 = vmatprep.subr.mxu0 0.0
  %738 = vmatpush1.msra.mxu0 0.0
  %739 = vmatprep.subr.mxu0 0.0
  %740 = vmatpush1.msra.mxu0 0.0
  %741 = vmatprep.subr.mxu0 0.0
  %742 = vmatpush1.msra.mxu0 0.0
  %743 = vmatprep.subr.mxu0 0.0
  %744 = vmatpush1.msra.mxu0 0.0
  %745 = vmatprep.subr.mxu0 0.0
  %746 = vmatpush1.msra.mxu0 0.0
  %747 = vmatprep.subr.mxu0 0.0
  %748 = vmatpush1.msra.mxu0 0.0
  %749 = vmatprep.subr.mxu0 0.0
  %750 = vmatpush1.msra.mxu0 0.0
  %751 = vmatprep.subr.mxu0 0.0
  %752 = vmatpush1.msra.mxu0 0.0
  %753 = vmatprep.subr.mxu0 0.0
  %754 = vmatpush1.msra.mxu0 0.0
  %755 = vmatprep.subr.mxu0 0.0
  %756 = vmatpush1.msra.mxu0 0.0
  %757 = vmatprep.subr.mxu0 0.0
  %758 = vmatpush1.msra.mxu0 0.0
  %759 = vmatprep.subr.mxu0 0.0
  %760 = vmatpush1.msra.mxu0 0.0
  %761 = vmatprep.subr.mxu0 0.0
  %762 = vmatpush1.msra.mxu0 0.0
  %763 = vmatprep.subr.mxu0 0.0
  %764 = vmatpush1.msra.mxu0 0.0
  %765 = vmatprep.subr.mxu0 0.0
  %766 = vmatpush1.msra.mxu0 0.0
  %767 = vmatprep.subr.mxu0 0.0
  %768 = vmatpush1.msra.mxu0 0.0
  %769 = vmatprep.subr.mxu0 0.0
  %770 = vmatpush1.msra.mxu0 0.0
  %771 = vmatprep.subr.mxu0 0.0
  %772 = vmatpush1.msra.mxu0 0.0
  %773 = vmatprep.subr.mxu0 0.0
  %774 = vmatpush1.msra.mxu0 0.0
  %775 = vmatprep.subr.mxu0 0.0
  %776 = vmatpush1.msra.mxu0 0.0
  %777 = vmatprep.subr.mxu0 0.0
  %778 = vmatpush1.msra.mxu0 0.0
  %779 = vmatprep.subr.mxu0 0.0
  %780 = vmatpush1.msra.mxu0 0.0
  %781 = vmatprep.subr.mxu0 0.0
  %782 = vmatpush1.msra.mxu0 0.0
  %783 = vmatprep.subr.mxu0 0.0
  %784 = vmatpush1.msra.mxu0 0.0
  %785 = vmatprep.mubr.f32.mxu0 0.0
  %786 = vmatmul.mubr.f32.gmra.mrb[0].mxu0 %v719
  %v787 = vpop.f32.mrb[0].mxu0
  %v788 = vadd.f32 0.0, %v787
  %v789 = vpop.f32.mrb[0].mxu0
  %v790 = vadd.f32 0.0, %v789
  %791 = vdwg.mxu0
  %792 = vmatprep.subr.mxu0 %v713
  %793 = vmatpush1.msra.mxu0 %v712
  %794 = vmatprep.subr.mxu0 %v717
  %795 = vmatpush1.msra.mxu0 %v716
  %796 = vmatprep.subr.mxu0 0.0
  %797 = vmatpush1.msra.mxu0 0.0
  %798 = vmatprep.subr.mxu0 0.0
  %799 = vmatpush1.msra.mxu0 0.0
  %800 = vmatprep.subr.mxu0 0.0
  %801 = vmatpush1.msra.mxu0 0.0
  %802 = vmatprep.subr.mxu0 0.0
  %803 = vmatpush1.msra.mxu0 0.0
  %804 = vmatprep.subr.mxu0 0.0
  %805 = vmatpush1.msra.mxu0 0.0
  %806 = vmatprep.subr.mxu0 0.0
  %807 = vmatpush1.msra.mxu0 0.0
  %808 = vmatprep.subr.mxu0 0.0
  %809 = vmatpush1.msra.mxu0 0.0
  %810 = vmatprep.subr.mxu0 0.0
  %811 = vmatpush1.msra.mxu0 0.0
  %812 = vmatprep.subr.mxu0 0.0
  %813 = vmatpush1.msra.mxu0 0.0
  %814 = vmatprep.subr.mxu0 0.0
  %815 = vmatpush1.msra.mxu0 0.0
  %816 = vmatprep.subr.mxu0 0.0
  %817 = vmatpush1.msra.mxu0 0.0
  %818 = vmatprep.subr.mxu0 0.0
  %819 = vmatpush1.msra.mxu0 0.0
  %820 = vmatprep.subr.mxu0 0.0
  %821 = vmatpush1.msra.mxu0 0.0
  %822 = vmatprep.subr.mxu0 0.0
  %823 = vmatpush1.msra.mxu0 0.0
  %824 = vmatprep.subr.mxu0 0.0
  %825 = vmatpush1.msra.mxu0 0.0
  %826 = vmatprep.subr.mxu0 0.0
  %827 = vmatpush1.msra.mxu0 0.0
  %828 = vmatprep.subr.mxu0 0.0
  %829 = vmatpush1.msra.mxu0 0.0
  %830 = vmatprep.subr.mxu0 0.0
  %831 = vmatpush1.msra.mxu0 0.0
  %832 = vmatprep.subr.mxu0 0.0
  %833 = vmatpush1.msra.mxu0 0.0
  %834 = vmatprep.subr.mxu0 0.0
  %835 = vmatpush1.msra.mxu0 0.0
  %836 = vmatprep.subr.mxu0 0.0
  %837 = vmatpush1.msra.mxu0 0.0
  %838 = vmatprep.subr.mxu0 0.0
  %839 = vmatpush1.msra.mxu0 0.0
  %840 = vmatprep.subr.mxu0 0.0
  %841 = vmatpush1.msra.mxu0 0.0
  %842 = vmatprep.subr.mxu0 0.0
  %843 = vmatpush1.msra.mxu0 0.0
  %844 = vmatprep.subr.mxu0 0.0
  %845 = vmatpush1.msra.mxu0 0.0
  %846 = vmatprep.subr.mxu0 0.0
  %847 = vmatpush1.msra.mxu0 0.0
  %848 = vmatprep.subr.mxu0 0.0
  %849 = vmatpush1.msra.mxu0 0.0
  %850 = vmatprep.subr.mxu0 0.0
  %851 = vmatpush1.msra.mxu0 0.0
  %852 = vmatprep.subr.mxu0 0.0
  %853 = vmatpush1.msra.mxu0 0.0
  %854 = vmatprep.subr.mxu0 0.0
  %855 = vmatpush1.msra.mxu0 0.0
  %856 = vmatprep.mubr.f32.mxu0 0.0
  %857 = vmatmul.mubr.f32.gmra.mrb[0].mxu0 %v719
  %v858 = vpop.f32.mrb[0].mxu0
  %v859 = vadd.f32 0.0, %v858
  %v860 = vpop.f32.mrb[0].mxu0
  %v861 = vadd.f32 0.0, %v860
  %862 = vdwg.mxu0
  %v864 = vsel %vm32, %v699, 0
  %866 = vmatprep.subr.mxu0 %v701
  %867 = vmatpush1.msra.mxu0 %v700
  %868 = vmatprep.subr.mxu0 %v705
  %869 = vmatpush1.msra.mxu0 %v704
  %870 = vmatprep.subr.mxu0 0.0
  %871 = vmatpush1.msra.mxu0 0.0
  %872 = vmatprep.subr.mxu0 0.0
  %873 = vmatpush1.msra.mxu0 0.0
  %874 = vmatprep.subr.mxu0 0.0
  %875 = vmatpush1.msra.mxu0 0.0
  %876 = vmatprep.subr.mxu0 0.0
  %877 = vmatpush1.msra.mxu0 0.0
  %878 = vmatprep.subr.mxu0 0.0
  %879 = vmatpush1.msra.mxu0 0.0
  %880 = vmatprep.subr.mxu0 0.0
  %881 = vmatpush1.msra.mxu0 0.0
  %882 = vmatprep.subr.mxu0 0.0
  %883 = vmatpush1.msra.mxu0 0.0
  %884 = vmatprep.subr.mxu0 0.0
  %885 = vmatpush1.msra.mxu0 0.0
  %886 = vmatprep.subr.mxu0 0.0
  %887 = vmatpush1.msra.mxu0 0.0
  %888 = vmatprep.subr.mxu0 0.0
  %889 = vmatpush1.msra.mxu0 0.0
  %890 = vmatprep.subr.mxu0 0.0
  %891 = vmatpush1.msra.mxu0 0.0
  %892 = vmatprep.subr.mxu0 0.0
  %893 = vmatpush1.msra.mxu0 0.0
  %894 = vmatprep.subr.mxu0 0.0
  %895 = vmatpush1.msra.mxu0 0.0
  %896 = vmatprep.subr.mxu0 0.0
  %897 = vmatpush1.msra.mxu0 0.0
  %898 = vmatprep.subr.mxu0 0.0
  %899 = vmatpush1.msra.mxu0 0.0
  %900 = vmatprep.subr.mxu0 0.0
  %901 = vmatpush1.msra.mxu0 0.0
  %902 = vmatprep.subr.mxu0 0.0
  %903 = vmatpush1.msra.mxu0 0.0
  %904 = vmatprep.subr.mxu0 0.0
  %905 = vmatpush1.msra.mxu0 0.0
  %906 = vmatprep.subr.mxu0 0.0
  %907 = vmatpush1.msra.mxu0 0.0
  %908 = vmatprep.subr.mxu0 0.0
  %909 = vmatpush1.msra.mxu0 0.0
  %910 = vmatprep.subr.mxu0 0.0
  %911 = vmatpush1.msra.mxu0 0.0
  %912 = vmatprep.subr.mxu0 0.0
  %913 = vmatpush1.msra.mxu0 0.0
  %914 = vmatprep.subr.mxu0 0.0
  %915 = vmatpush1.msra.mxu0 0.0
  %916 = vmatprep.subr.mxu0 0.0
  %917 = vmatpush1.msra.mxu0 0.0
  %918 = vmatprep.subr.mxu0 0.0
  %919 = vmatpush1.msra.mxu0 0.0
  %920 = vmatprep.subr.mxu0 0.0
  %921 = vmatpush1.msra.mxu0 0.0
  %922 = vmatprep.subr.mxu0 0.0
  %923 = vmatpush1.msra.mxu0 0.0
  %924 = vmatprep.subr.mxu0 0.0
  %925 = vmatpush1.msra.mxu0 0.0
  %926 = vmatprep.subr.mxu0 0.0
  %927 = vmatpush1.msra.mxu0 0.0
  %928 = vmatprep.subr.mxu0 0.0
  %929 = vmatpush1.msra.mxu0 0.0
  %930 = vmatprep.mubr.f32.mxu0 0.0
  %931 = vmatmul.mubr.f32.gmra.mrb[0].mxu0 %v864
  %v932 = vpop.f32.mrb[0].mxu0
  %v933 = vadd.f32 %v788, %v932
  %v934 = vpop.f32.mrb[0].mxu0
  %v935 = vadd.f32 %v790, %v934
  %936 = vdwg.mxu0
  %937 = vmatprep.subr.mxu0 %v703
  %938 = vmatpush1.msra.mxu0 %v702
  %939 = vmatprep.subr.mxu0 %v707
  %940 = vmatpush1.msra.mxu0 %v706
  %941 = vmatprep.subr.mxu0 0.0
  %942 = vmatpush1.msra.mxu0 0.0
  %943 = vmatprep.subr.mxu0 0.0
  %944 = vmatpush1.msra.mxu0 0.0
  %945 = vmatprep.subr.mxu0 0.0
  %946 = vmatpush1.msra.mxu0 0.0
  %947 = vmatprep.subr.mxu0 0.0
  %948 = vmatpush1.msra.mxu0 0.0
  %949 = vmatprep.subr.mxu0 0.0
  %950 = vmatpush1.msra.mxu0 0.0
  %951 = vmatprep.subr.mxu0 0.0
  %952 = vmatpush1.msra.mxu0 0.0
  %953 = vmatprep.subr.mxu0 0.0
  %954 = vmatpush1.msra.mxu0 0.0
  %955 = vmatprep.subr.mxu0 0.0
  %956 = vmatpush1.msra.mxu0 0.0
  %957 = vmatprep.subr.mxu0 0.0
  %958 = vmatpush1.msra.mxu0 0.0
  %959 = vmatprep.subr.mxu0 0.0
  %960 = vmatpush1.msra.mxu0 0.0
  %961 = vmatprep.subr.mxu0 0.0
  %962 = vmatpush1.msra.mxu0 0.0
  %963 = vmatprep.subr.mxu0 0.0
  %964 = vmatpush1.msra.mxu0 0.0
  %965 = vmatprep.subr.mxu0 0.0
  %966 = vmatpush1.msra.mxu0 0.0
  %967 = vmatprep.subr.mxu0 0.0
  %968 = vmatpush1.msra.mxu0 0.0
  %969 = vmatprep.subr.mxu0 0.0
  %970 = vmatpush1.msra.mxu0 0.0
  %971 = vmatprep.subr.mxu0 0.0
  %972 = vmatpush1.msra.mxu0 0.0
  %973 = vmatprep.subr.mxu0 0.0
  %974 = vmatpush1.msra.mxu0 0.0
  %975 = vmatprep.subr.mxu0 0.0
  %976 = vmatpush1.msra.mxu0 0.0
  %977 = vmatprep.subr.mxu0 0.0
  %978 = vmatpush1.msra.mxu0 0.0
  %979 = vmatprep.subr.mxu0 0.0
  %980 = vmatpush1.msra.mxu0 0.0
  %981 = vmatprep.subr.mxu0 0.0
  %982 = vmatpush1.msra.mxu0 0.0
  %983 = vmatprep.subr.mxu0 0.0
  %984 = vmatpush1.msra.mxu0 0.0
  %985 = vmatprep.subr.mxu0 0.0
  %986 = vmatpush1.msra.mxu0 0.0
  %987 = vmatprep.subr.mxu0 0.0
  %988 = vmatpush1.msra.mxu0 0.0
  %989 = vmatprep.subr.mxu0 0.0
  %990 = vmatpush1.msra.mxu0 0.0
  %991 = vmatprep.subr.mxu0 0.0
  %992 = vmatpush1.msra.mxu0 0.0
  %993 = vmatprep.subr.mxu0 0.0
  %994 = vmatpush1.msra.mxu0 0.0
  %995 = vmatprep.subr.mxu0 0.0
  %996 = vmatpush1.msra.mxu0 0.0
  %997 = vmatprep.subr.mxu0 0.0
  %998 = vmatpush1.msra.mxu0 0.0
  %999 = vmatprep.subr.mxu0 0.0
  %1000 = vmatpush1.msra.mxu0 0.0
  %1001 = vmatprep.mubr.f32.mxu0 0.0
  %1002 = vmatmul.mubr.f32.gmra.mrb[0].mxu0 %v864
  %v1003 = vpop.f32.mrb[0].mxu0
  %v1004 = vadd.f32 %v859, %v1003
  %v1005 = vpop.f32.mrb[0].mxu0
  %v1006 = vadd.f32 %v861, %v1005
  %1007 = vdwg.mxu0
  %1008 = vst [vmem:[%s2 + $0x20] sm:$0xf] %v933
  %1009 = vst [vmem:[%s2 + $0x28] sm:$0xf] %v935
  %1010 = vst [vmem:[%s2 + $0x30] sm:$0xf] %v1004
  %1011 = vst [vmem:[%s2 + $0x38] sm:$0xf] %v1006
  %v1012 = vsel %vm327, %v933, 0.0
  %v1013 = vsel %vm327, %v935, 0.0
  %v1014 = vadd.f32 %v1012, %v1013
  %v1015 = vsel %vm327, %v1004, 0.0
  %v1016 = vadd.f32 %v1014, %v1015
  %v1017 = vsel %vm327, %v1006, 0.0
  %v1018 = vadd.f32 %v1016, %v1017
  %1019 = vadd.xlane.f32.xlu0 %v1018
  %v1020 = vpop.xlane.xlu0 %1019
  %v1021 = vmul.f32 %v933, %v933
  %v1022 = vmul.f32 %v935, %v935
  %v1023 = vmul.f32 %v1004, %v1004
  %v1024 = vmul.f32 %v1006, %v1006
  %v1025 = vsel %vm327, %v1021, 0.0
  %v1026 = vsel %vm327, %v1022, 0.0
  %v1027 = vadd.f32 %v1025, %v1026
  %v1028 = vsel %vm327, %v1023, 0.0
  %v1029 = vadd.f32 %v1027, %v1028
  %v1030 = vsel %vm327, %v1024, 0.0
  %v1031 = vadd.f32 %v1029, %v1030
  %1032 = vadd.xlane.f32.xlu0 %v1031
  %v1033 = vpop.xlane.xlu0 %1032
  %s1034 = scalar_lea.vmem %s1, 24
  %v1035 = vld [vmem:[%s1034] sm:$0xf]
  %v1036 = vld [vmem:[%s0 + $0x80] sm:$0xff]
  %v1037 = vld [vmem:[%s0 + $0x88] sm:$0xff]
  %v1038 = vld [vmem:[%s0 + $0x90] sm:$0xff]
  %v1039 = vld [vmem:[%s0 + $0x98] sm:$0xff]
  %v1040 = vld [vmem:[%s0 + $0xa0] sm:$0xff]
  %v1041 = vld [vmem:[%s0 + $0xa8] sm:$0xff]
  %v1042 = vld [vmem:[%s0 + $0xb0] sm:$0xff]
  %v1043 = vld [vmem:[%s0 + $0xb8] sm:$0xff]
  %s1044 = scalar_lea.vmem %s1, 28
  %v1045 = vld [vmem:[%s1044] sm:$0xf]
  %v1046 = vld [vmem:[%s0 + $0xe0] sm:$0xff]
  %v1047 = vld [vmem:[%s0 + $0xe8] sm:$0xff]
  %v1048 = vld [vmem:[%s0 + $0xf0] sm:$0xff]
  %v1049 = vld [vmem:[%s0 + $0xf8] sm:$0xff]
  %v1050 = vld [vmem:[%s0 + $0x100] sm:$0xff]
  %v1051 = vld [vmem:[%s0 + $0x108] sm:$0xff]
  %v1052 = vld [vmem:[%s0 + $0x110] sm:$0xff]
  %v1053 = vld [vmem:[%s0 + $0x118] sm:$0xff]
  %v1055 = vsel %vm32, %v1045, 0
  %1057 = vmatprep.subr.mxu0 %v1047
  %1058 = vmatpush1.msra.mxu0 %v1046
  %1059 = vmatprep.subr.mxu0 %v1051
  %1060 = vmatpush1.msra.mxu0 %v1050
  %1061 = vmatprep.subr.mxu0 0.0
  %1062 = vmatpush1.msra.mxu0 0.0
  %1063 = vmatprep.subr.mxu0 0.0
  %1064 = vmatpush1.msra.mxu0 0.0
  %1065 = vmatprep.subr.mxu0 0.0
  %1066 = vmatpush1.msra.mxu0 0.0
  %1067 = vmatprep.subr.mxu0 0.0
  %1068 = vmatpush1.msra.mxu0 0.0
  %1069 = vmatprep.subr.mxu0 0.0
  %1070 = vmatpush1.msra.mxu0 0.0
  %1071 = vmatprep.subr.mxu0 0.0
  %1072 = vmatpush1.msra.mxu0 0.0
  %1073 = vmatprep.subr.mxu0 0.0
  %1074 = vmatpush1.msra.mxu0 0.0
  %1075 = vmatprep.subr.mxu0 0.0
  %1076 = vmatpush1.msra.mxu0 0.0
  %1077 = vmatprep.subr.mxu0 0.0
  %1078 = vmatpush1.msra.mxu0 0.0
  %1079 = vmatprep.subr.mxu0 0.0
  %1080 = vmatpush1.msra.mxu0 0.0
  %1081 = vmatprep.subr.mxu0 0.0
  %1082 = vmatpush1.msra.mxu0 0.0
  %1083 = vmatprep.subr.mxu0 0.0
  %1084 = vmatpush1.msra.mxu0 0.0
  %1085 = vmatprep.subr.mxu0 0.0
  %1086 = vmatpush1.msra.mxu0 0.0
  %1087 = vmatprep.subr.mxu0 0.0
  %1088 = vmatpush1.msra.mxu0 0.0
  %1089 = vmatprep.subr.mxu0 0.0
  %1090 = vmatpush1.msra.mxu0 0.0
  %1091 = vmatprep.subr.mxu0 0.0
  %1092 = vmatpush1.msra.mxu0 0.0
  %1093 = vmatprep.subr.mxu0 0.0
  %1094 = vmatpush1.msra.mxu0 0.0
  %1095 = vmatprep.subr.mxu0 0.0
  %1096 = vmatpush1.msra.mxu0 0.0
  %1097 = vmatprep.subr.mxu0 0.0
  %1098 = vmatpush1.msra.mxu0 0.0
  %1099 = vmatprep.subr.mxu0 0.0
  %1100 = vmatpush1.msra.mxu0 0.0
  %1101 = vmatprep.subr.mxu0 0.0
  %1102 = vmatpush1.msra.mxu0 0.0
  %1103 = vmatprep.subr.mxu0 0.0
  %1104 = vmatpush1.msra.mxu0 0.0
  %1105 = vmatprep.subr.mxu0 0.0
  %1106 = vmatpush1.msra.mxu0 0.0
  %1107 = vmatprep.subr.mxu0 0.0
  %1108 = vmatpush1.msra.mxu0 0.0
  %1109 = vmatprep.subr.mxu0 0.0
  %1110 = vmatpush1.msra.mxu0 0.0
  %1111 = vmatprep.subr.mxu0 0.0
  %1112 = vmatpush1.msra.mxu0 0.0
  %1113 = vmatprep.subr.mxu0 0.0
  %1114 = vmatpush1.msra.mxu0 0.0
  %1115 = vmatprep.subr.mxu0 0.0
  %1116 = vmatpush1.msra.mxu0 0.0
  %1117 = vmatprep.subr.mxu0 0.0
  %1118 = vmatpush1.msra.mxu0 0.0
  %1119 = vmatprep.subr.mxu0 0.0
  %1120 = vmatpush1.msra.mxu0 0.0
  %1121 = vmatprep.mubr.f32.mxu0 0.0
  %1122 = vmatmul.mubr.f32.gmra.mrb[0].mxu0 %v1055
  %v1123 = vpop.f32.mrb[0].mxu0
  %v1124 = vadd.f32 0.0, %v1123
  %v1125 = vpop.f32.mrb[0].mxu0
  %v1126 = vadd.f32 0.0, %v1125
  %1127 = vdwg.mxu0
  %1128 = vmatprep.subr.mxu0 %v1049
  %1129 = vmatpush1.msra.mxu0 %v1048
  %1130 = vmatprep.subr.mxu0 %v1053
  %1131 = vmatpush1.msra.mxu0 %v1052
  %1132 = vmatprep.subr.mxu0 0.0
  %1133 = vmatpush1.msra.mxu0 0.0
  %1134 = vmatprep.subr.mxu0 0.0
  %1135 = vmatpush1.msra.mxu0 0.0
  %1136 = vmatprep.subr.mxu0 0.0
  %1137 = vmatpush1.msra.mxu0 0.0
  %1138 = vmatprep.subr.mxu0 0.0
  %1139 = vmatpush1.msra.mxu0 0.0
  %1140 = vmatprep.subr.mxu0 0.0
  %1141 = vmatpush1.msra.mxu0 0.0
  %1142 = vmatprep.subr.mxu0 0.0
  %1143 = vmatpush1.msra.mxu0 0.0
  %1144 = vmatprep.subr.mxu0 0.0
  %1145 = vmatpush1.msra.mxu0 0.0
  %1146 = vmatprep.subr.mxu0 0.0
  %1147 = vmatpush1.msra.mxu0 0.0
  %1148 = vmatprep.subr.mxu0 0.0
  %1149 = vmatpush1.msra.mxu0 0.0
  %1150 = vmatprep.subr.mxu0 0.0
  %1151 = vmatpush1.msra.mxu0 0.0
  %1152 = vmatprep.subr.mxu0 0.0
  %1153 = vmatpush1.msra.mxu0 0.0
  %1154 = vmatprep.subr.mxu0 0.0
  %1155 = vmatpush1.msra.mxu0 0.0
  %1156 = vmatprep.subr.mxu0 0.0
  %1157 = vmatpush1.msra.mxu0 0.0
  %1158 = vmatprep.subr.mxu0 0.0
  %1159 = vmatpush1.msra.mxu0 0.0
  %1160 = vmatprep.subr.mxu0 0.0
  %1161 = vmatpush1.msra.mxu0 0.0
  %1162 = vmatprep.subr.mxu0 0.0
  %1163 = vmatpush1.msra.mxu0 0.0
  %1164 = vmatprep.subr.mxu0 0.0
  %1165 = vmatpush1.msra.mxu0 0.0
  %1166 = vmatprep.subr.mxu0 0.0
  %1167 = vmatpush1.msra.mxu0 0.0
  %1168 = vmatprep.subr.mxu0 0.0
  %1169 = vmatpush1.msra.mxu0 0.0
  %1170 = vmatprep.subr.mxu0 0.0
  %1171 = vmatpush1.msra.mxu0 0.0
  %1172 = vmatprep.subr.mxu0 0.0
  %1173 = vmatpush1.msra.mxu0 0.0
  %1174 = vmatprep.subr.mxu0 0.0
  %1175 = vmatpush1.msra.mxu0 0.0
  %1176 = vmatprep.subr.mxu0 0.0
  %1177 = vmatpush1.msra.mxu0 0.0
  %1178 = vmatprep.subr.mxu0 0.0
  %1179 = vmatpush1.msra.mxu0 0.0
  %1180 = vmatprep.subr.mxu0 0.0
  %1181 = vmatpush1.msra.mxu0 0.0
  %1182 = vmatprep.subr.mxu0 0.0
  %1183 = vmatpush1.msra.mxu0 0.0
  %1184 = vmatprep.subr.mxu0 0.0
  %1185 = vmatpush1.msra.mxu0 0.0
  %1186 = vmatprep.subr.mxu0 0.0
  %1187 = vmatpush1.msra.mxu0 0.0
  %1188 = vmatprep.subr.mxu0 0.0
  %1189 = vmatpush1.msra.mxu0 0.0
  %1190 = vmatprep.subr.mxu0 0.0
  %1191 = vmatpush1.msra.mxu0 0.0
  %1192 = vmatprep.mubr.f32.mxu0 0.0
  %1193 = vmatmul.mubr.f32.gmra.mrb[0].mxu0 %v1055
  %v1194 = vpop.f32.mrb[0].mxu0
  %v1195 = vadd.f32 0.0, %v1194
  %v1196 = vpop.f32.mrb[0].mxu0
  %v1197 = vadd.f32 0.0, %v1196
  %1198 = vdwg.mxu0
  %v1200 = vsel %vm32, %v1035, 0
  %1202 = vmatprep.subr.mxu0 %v1037
  %1203 = vmatpush1.msra.mxu0 %v1036
  %1204 = vmatprep.subr.mxu0 %v1041
  %1205 = vmatpush1.msra.mxu0 %v1040
  %1206 = vmatprep.subr.mxu0 0.0
  %1207 = vmatpush1.msra.mxu0 0.0
  %1208 = vmatprep.subr.mxu0 0.0
  %1209 = vmatpush1.msra.mxu0 0.0
  %1210 = vmatprep.subr.mxu0 0.0
  %1211 = vmatpush1.msra.mxu0 0.0
  %1212 = vmatprep.subr.mxu0 0.0
  %1213 = vmatpush1.msra.mxu0 0.0
  %1214 = vmatprep.subr.mxu0 0.0
  %1215 = vmatpush1.msra.mxu0 0.0
  %1216 = vmatprep.subr.mxu0 0.0
  %1217 = vmatpush1.msra.mxu0 0.0
  %1218 = vmatprep.subr.mxu0 0.0
  %1219 = vmatpush1.msra.mxu0 0.0
  %1220 = vmatprep.subr.mxu0 0.0
  %1221 = vmatpush1.msra.mxu0 0.0
  %1222 = vmatprep.subr.mxu0 0.0
  %1223 = vmatpush1.msra.mxu0 0.0
  %1224 = vmatprep.subr.mxu0 0.0
  %1225 = vmatpush1.msra.mxu0 0.0
  %1226 = vmatprep.subr.mxu0 0.0
  %1227 = vmatpush1.msra.mxu0 0.0
  %1228 = vmatprep.subr.mxu0 0.0
  %1229 = vmatpush1.msra.mxu0 0.0
  %1230 = vmatprep.subr.mxu0 0.0
  %1231 = vmatpush1.msra.mxu0 0.0
  %1232 = vmatprep.subr.mxu0 0.0
  %1233 = vmatpush1.msra.mxu0 0.0
  %1234 = vmatprep.subr.mxu0 0.0
  %1235 = vmatpush1.msra.mxu0 0.0
  %1236 = vmatprep.subr.mxu0 0.0
  %1237 = vmatpush1.msra.mxu0 0.0
  %1238 = vmatprep.subr.mxu0 0.0
  %1239 = vmatpush1.msra.mxu0 0.0
  %1240 = vmatprep.subr.mxu0 0.0
  %1241 = vmatpush1.msra.mxu0 0.0
  %1242 = vmatprep.subr.mxu0 0.0
  %1243 = vmatpush1.msra.mxu0 0.0
  %1244 = vmatprep.subr.mxu0 0.0
  %1245 = vmatpush1.msra.mxu0 0.0
  %1246 = vmatprep.subr.mxu0 0.0
  %1247 = vmatpush1.msra.mxu0 0.0
  %1248 = vmatprep.subr.mxu0 0.0
  %1249 = vmatpush1.msra.mxu0 0.0
  %1250 = vmatprep.subr.mxu0 0.0
  %1251 = vmatpush1.msra.mxu0 0.0
  %1252 = vmatprep.subr.mxu0 0.0
  %1253 = vmatpush1.msra.mxu0 0.0
  %1254 = vmatprep.subr.mxu0 0.0
  %1255 = vmatpush1.msra.mxu0 0.0
  %1256 = vmatprep.subr.mxu0 0.0
  %1257 = vmatpush1.msra.mxu0 0.0
  %1258 = vmatprep.subr.mxu0 0.0
  %1259 = vmatpush1.msra.mxu0 0.0
  %1260 = vmatprep.subr.mxu0 0.0
  %1261 = vmatpush1.msra.mxu0 0.0
  %1262 = vmatprep.subr.mxu0 0.0
  %1263 = vmatpush1.msra.mxu0 0.0
  %1264 = vmatprep.subr.mxu0 0.0
  %1265 = vmatpush1.msra.mxu0 0.0
  %1266 = vmatprep.mubr.f32.mxu0 0.0
  %1267 = vmatmul.mubr.f32.gmra.mrb[0].mxu0 %v1200
  %v1268 = vpop.f32.mrb[0].mxu0
  %v1269 = vadd.f32 %v1124, %v1268
  %v1270 = vpop.f32.mrb[0].mxu0
  %v1271 = vadd.f32 %v1126, %v1270
  %1272 = vdwg.mxu0
  %1273 = vmatprep.subr.mxu0 %v1039
  %1274 = vmatpush1.msra.mxu0 %v1038
  %1275 = vmatprep.subr.mxu0 %v1043
  %1276 = vmatpush1.msra.mxu0 %v1042
  %1277 = vmatprep.subr.mxu0 0.0
  %1278 = vmatpush1.msra.mxu0 0.0
  %1279 = vmatprep.subr.mxu0 0.0
  %1280 = vmatpush1.msra.mxu0 0.0
  %1281 = vmatprep.subr.mxu0 0.0
  %1282 = vmatpush1.msra.mxu0 0.0
  %1283 = vmatprep.subr.mxu0 0.0
  %1284 = vmatpush1.msra.mxu0 0.0
  %1285 = vmatprep.subr.mxu0 0.0
  %1286 = vmatpush1.msra.mxu0 0.0
  %1287 = vmatprep.subr.mxu0 0.0
  %1288 = vmatpush1.msra.mxu0 0.0
  %1289 = vmatprep.subr.mxu0 0.0
  %1290 = vmatpush1.msra.mxu0 0.0
  %1291 = vmatprep.subr.mxu0 0.0
  %1292 = vmatpush1.msra.mxu0 0.0
  %1293 = vmatprep.subr.mxu0 0.0
  %1294 = vmatpush1.msra.mxu0 0.0
  %1295 = vmatprep.subr.mxu0 0.0
  %1296 = vmatpush1.msra.mxu0 0.0
  %1297 = vmatprep.subr.mxu0 0.0
  %1298 = vmatpush1.msra.mxu0 0.0
  %1299 = vmatprep.subr.mxu0 0.0
  %1300 = vmatpush1.msra.mxu0 0.0
  %1301 = vmatprep.subr.mxu0 0.0
  %1302 = vmatpush1.msra.mxu0 0.0
  %1303 = vmatprep.subr.mxu0 0.0
  %1304 = vmatpush1.msra.mxu0 0.0
  %1305 = vmatprep.subr.mxu0 0.0
  %1306 = vmatpush1.msra.mxu0 0.0
  %1307 = vmatprep.subr.mxu0 0.0
  %1308 = vmatpush1.msra.mxu0 0.0
  %1309 = vmatprep.subr.mxu0 0.0
  %1310 = vmatpush1.msra.mxu0 0.0
  %1311 = vmatprep.subr.mxu0 0.0
  %1312 = vmatpush1.msra.mxu0 0.0
  %1313 = vmatprep.subr.mxu0 0.0
  %1314 = vmatpush1.msra.mxu0 0.0
  %1315 = vmatprep.subr.mxu0 0.0
  %1316 = vmatpush1.msra.mxu0 0.0
  %1317 = vmatprep.subr.mxu0 0.0
  %1318 = vmatpush1.msra.mxu0 0.0
  %1319 = vmatprep.subr.mxu0 0.0
  %1320 = vmatpush1.msra.mxu0 0.0
  %1321 = vmatprep.subr.mxu0 0.0
  %1322 = vmatpush1.msra.mxu0 0.0
  %1323 = vmatprep.subr.mxu0 0.0
  %1324 = vmatpush1.msra.mxu0 0.0
  %1325 = vmatprep.subr.mxu0 0.0
  %1326 = vmatpush1.msra.mxu0 0.0
  %1327 = vmatprep.subr.mxu0 0.0
  %1328 = vmatpush1.msra.mxu0 0.0
  %1329 = vmatprep.subr.mxu0 0.0
  %1330 = vmatpush1.msra.mxu0 0.0
  %1331 = vmatprep.subr.mxu0 0.0
  %1332 = vmatpush1.msra.mxu0 0.0
  %1333 = vmatprep.subr.mxu0 0.0
  %1334 = vmatpush1.msra.mxu0 0.0
  %1335 = vmatprep.subr.mxu0 0.0
  %1336 = vmatpush1.msra.mxu0 0.0
  %1337 = vmatprep.mubr.f32.mxu0 0.0
  %1338 = vmatmul.mubr.f32.gmra.mrb[0].mxu0 %v1200
  %v1339 = vpop.f32.mrb[0].mxu0
  %v1340 = vadd.f32 %v1195, %v1339
  %v1341 = vpop.f32.mrb[0].mxu0
  %v1342 = vadd.f32 %v1197, %v1341
  %1343 = vdwg.mxu0
  %v1348 = vrot.slane %v1269, 4
  %v1349 = vrot.slane %v1271, 4
  %v1350 = vrot.slane %v1340, 4
  %v1351 = vrot.slane %v1342, 4
  %1356 = vst [vmem:[%s2 + $0x20] sm:$0xf0] %v1348
  %1357 = vst [vmem:[%s2 + $0x28] sm:$0xf0] %v1349
  %1358 = vst [vmem:[%s2 + $0x30] sm:$0xf0] %v1350
  %1359 = vst [vmem:[%s2 + $0x38] sm:$0xf0] %v1351
  %v1360 = vsel %vm327, %v1269, 0.0
  %v1361 = vsel %vm327, %v1271, 0.0
  %v1362 = vadd.f32 %v1360, %v1361
  %v1363 = vsel %vm327, %v1340, 0.0
  %v1364 = vadd.f32 %v1362, %v1363
  %v1365 = vsel %vm327, %v1342, 0.0
  %v1366 = vadd.f32 %v1364, %v1365
  %1367 = vadd.xlane.f32.xlu0 %v1366
  %v1368 = vpop.xlane.xlu0 %1367
  %v1369 = vmul.f32 %v1269, %v1269
  %v1370 = vmul.f32 %v1271, %v1271
  %v1371 = vmul.f32 %v1340, %v1340
  %v1372 = vmul.f32 %v1342, %v1342
  %v1373 = vsel %vm327, %v1369, 0.0
  %v1374 = vsel %vm327, %v1370, 0.0
  %v1375 = vadd.f32 %v1373, %v1374
  %v1376 = vsel %vm327, %v1371, 0.0
  %v1377 = vadd.f32 %v1375, %v1376
  %v1378 = vsel %vm327, %v1372, 0.0
  %v1379 = vadd.f32 %v1377, %v1378
  %1380 = vadd.xlane.f32.xlu0 %v1379
  %v1381 = vpop.xlane.xlu0 %1380
  %v1383 = vrot.slane %v684, 4
  %v1386 = vrot.slane %v1368, 4
  %v1388 = vsel %vm327, %v336, %v1383
  %v1389 = vsel %vm327, %v1020, %v1386
  %v1391 = vrot.slane %v697, 4
  %v1394 = vrot.slane %v1381, 4
  %v1396 = vsel %vm327, %v349, %v1391
  %v1397 = vsel %vm327, %v1033, %v1394
  %1400 = vrot.lane.b32.xlu0 %v1396, 1
  %v1401 = vpop.permute.xlu0 %1400
  %1402 = vrot.lane.b32.xlu0 %v1397, 1
  %v1403 = vpop.permute.xlu0 %1402
  %vm1406 = vcmask 7168
  %v1407 = vsel %vm1406, %v1388, %v1401
  %v1408 = vsel %vm1406, %v1389, %v1403
  %vm1409 = vcmask 15360
  %1410 = vst.msk [vmem:[%s3] sm:$0xff] %vm1409, %v1407
  %1411 = vst.msk [vmem:[%s3 + $0x8] sm:$0xff] %vm1409, %v1408
  // Predicated region
  $region10: #{unet_up_forward.1} parent=0 // pred_check
    _
  $region11: #{unet_up_forward.1} parent=0 // pred_check_branch
    %1413 = sbr.rel (0) target = $region13
  $region12: #{unet_up_forward.1} parent=0 // pred_region
    _
  $region13: #{unet_up_forward.1} parent=0 // pred_fallthru
    _
  // Predicated region
  $region14: #{unet_up_forward.1} parent=0 // pred_check
    _
  $region15: #{unet_up_forward.1} parent=0 // pred_check_branch
    %1415 = sbr.rel (0) target = $region17
  $region16: #{unet_up_forward.1} parent=0 // pred_region
    _
  $region17: #{unet_up_forward.1} parent=0 // pred_fallthru
    _
  // Predicated region
  $region18: #{unet_up_forward.1} parent=0 // pred_check
    _
  $region19: #{unet_up_forward.1} parent=0 // pred_check_branch
    %1417 = sbr.rel (0) target = $region21
  $region20: #{unet_up_forward.1} parent=0 // pred_region
    _
  $region21: #{unet_up_forward.1} parent=0 // pred_fallthru
    _
  // Predicated region
  $region22: #{unet_up_forward.1} parent=0 // pred_check
    _
  $region23: #{unet_up_forward.1} parent=0 // pred_check_branch
    %1419 = sbr.rel (0) target = $region25
  $region24: #{unet_up_forward.1} parent=0 // pred_region
    _
  $region25: #{unet_up_forward.1} parent=0 // pred_fallthru
    _

</llo_original>
